<compile_context>
chip_gen: v6e
topology: v6e:2x2x1
jax: 0.10.0
libtpu: 0.0.40
codegen_flags: <defaults>
</compile_context>

<pallas_src>
import functools

import jax
import jax.numpy as jnp
from jax.experimental import pallas as pl
from jax.experimental.pallas import tpu as pltpu

EPS = 1e-5


# ----------------------------------------------------------------------------
# Fused kernel: [net1 + gamma*net2 (1x1 conv) + BN2d] -> NCHW flatten -> [fc + BN1d]
#
#   weff_ref : SMEM (bes1, C_in)  f32   folded conv weight  (w1+gamma*w2)*bn2_scale, transposed
#   x_ref    : VMEM (TB, C_in*HW) bf16  block of x, natural NCHW-flattened layout
#   fcw_ref  : VMEM (bes1, HW, F) bf16  BN1d-folded fc weight, viewed per conv channel
#   fcb_ref  : VMEM (1, F)        f32   fully folded bias (fc bias + BN1d + conv/BN2d bias term)
#   o_ref    : VMEM (TB, F)       f32
# ----------------------------------------------------------------------------
def fused_kernel(weff_ref, x_ref, fcw_ref, fcb_ref, o_ref):
    tb = x_ref.shape[0]
    bes1, hw, f = fcw_ref.shape
    c_in = weff_ref.shape[1]

    acc = jnp.zeros((tb, f), jnp.float32)
    # bes1 and C_in are tiny and static -> fully unrolled.
    for c1 in range(bes1):
        # Folded 1x1-conv output channel c1 for the whole row block: (TB, HW), f32 VPU.
        # Channel slices of x are lane-aligned (offsets are multiples of HW=256).
        s = jnp.zeros((tb, hw), jnp.float32)
        for c in range(c_in):
            xc = x_ref[:, c * hw:(c + 1) * hw].astype(jnp.float32)
            s = s + weff_ref[c1, c] * xc
        # fc contraction over the HW axis on the MXU (bf16 operands, f32 accumulate).
        acc = acc + jnp.dot(s.astype(fcw_ref.dtype), fcw_ref[c1],
                            preferred_element_type=jnp.float32)
    o_ref[...] = (acc + fcb_ref[...]).astype(o_ref.dtype)


# ----------------------------------------------------------------------------
# Wrapper implementing ConcatNet_.forward (inference / eval-mode BN)
# ----------------------------------------------------------------------------
@functools.partial(jax.jit, static_argnames=("block_n", "compute_dtype"))
def concatnet_forward(x_nchw, params, *, block_n=8, compute_dtype=jnp.bfloat16):
    N, C_in, H, W = x_nchw.shape
    bes1 = params["w1"].shape[1]
    HW = H * W
    bes = bes1 * HW
    F = params["fc_w"].shape[1]

    # ---------------- algebraic folds (exact, recomputed every call) ----------------
    gamma = params["gamma"].reshape(())
    w_g = params["w1"] + gamma * params["w2"]                    # (C_in, bes1)
    b_g = params["b1"] + gamma * params["b2"]                    # (1, bes1)
    s2 = params["bn2_w"] * jax.lax.rsqrt(params["bn2_v"] + EPS)  # (1, bes1)
    w_eff = w_g * s2                                             # conv weight with BN2d folded
    b_eff = (b_g - params["bn2_m"]) * s2 + params["bn2_b"]       # (1, bes1)

    s1 = params["feat_w"] * jax.lax.rsqrt(params["feat_v"] + EPS)        # (1, F)
    fc_w_eff = params["fc_w"] * s1                                       # (bes, F)
    fc_b_eff = (params["fc_b"] - params["feat_m"]) * s1 + params["feat_b"]

    # NCHW flatten index = c1*HW + hw  ->  view fc weight as (bes1, HW, F); no permutation.
    fc_w3 = fc_w_eff.reshape(bes1, HW, F)
    # Fold the per-channel conv/BN2d bias into the fc bias:
    #   y += sum_{c1,hw} b_eff[c1] * fc_w3[c1,hw,f]
    fc_b_total = fc_b_eff + jnp.einsum("c,chf->f", b_eff.reshape(bes1), fc_w3)[None, :]

    weff_t = jnp.transpose(w_eff, (1, 0)).astype(jnp.float32)    # (bes1, C_in), SMEM scalars

    # ---------------- layout: natural NCHW, free reshape, batch padding -------------
    x2d = x_nchw.reshape(N, C_in * HW).astype(jnp.float32)
    Np = ((N + block_n - 1) // block_n) * block_n
    if Np != N:
        x2d = jnp.pad(x2d, ((0, Np - N), (0, 0)))
    x2d = x2d.astype(compute_dtype)
    fc_w3 = fc_w3.astype(compute_dtype)
    fc_b_total = fc_b_total.astype(jnp.float32)

    grid = (Np // block_n,)
    itemsize = jnp.dtype(compute_dtype).itemsize
    cost = pl.CostEstimate(
        flops=int(2 * Np * C_in * bes1 * HW + 2 * Np * bes * F),
        transcendentals=0,
        bytes_accessed=int(x2d.size * itemsize + fc_w3.size * itemsize
                           + F * 4 + Np * F * 4),
    )

    out = pl.pallas_call(
        fused_kernel,
        grid=grid,
        in_specs=[
            pl.BlockSpec(memory_space=pltpu.MemorySpace.SMEM),                # weff_t
            pl.BlockSpec((block_n, C_in * HW), lambda i: (i, 0)),             # x block
            pl.BlockSpec((bes1, HW, F), lambda i: (0, 0, 0)),                 # fc weight (resident)
            pl.BlockSpec((1, F), lambda i: (0, 0)),                           # folded bias
        ],
        out_specs=pl.BlockSpec((block_n, F), lambda i: (i, 0)),
        out_shape=jax.ShapeDtypeStruct((Np, F), jnp.float32),
        compiler_params=pltpu.CompilerParams(
            dimension_semantics=("parallel",),
            vmem_limit_bytes=32 * 1024 * 1024,
        ),
        cost_estimate=cost,
    )(weff_t, x2d, fc_w3, fc_b_total)

    return out[:N]


# ----------------------------------------------------------------------------
# Parameter construction (module-faithful defaults) and pure-JAX reference
# ----------------------------------------------------------------------------
def init_params(key, c_in, bes1, h, w, num_features=512):
    bes = bes1 * h * w
    k1, k2, k3 = jax.random.split(key, 3)
    return {
        # net1 / net2: synthetic 1x1 convs, weights ~ N(0, 0.1) per the module init loop
        "w1": (0.1 * jax.random.normal(k1, (c_in, bes1))).astype(jnp.float32),
        "b1": jnp.zeros((1, bes1), jnp.float32),
        "w2": (0.1 * jax.random.normal(k2, (c_in, bes1))).astype(jnp.float32),
        "b2": jnp.zeros((1, bes1), jnp.float32),
        # gamma = nn.Parameter(torch.zeros(1))
        "gamma": jnp.zeros((1, 1), jnp.float32),
        # bn2 = BatchNorm2d(bes1): weight=1, bias=0, running_mean=0, running_var=1
        "bn2_w": jnp.ones((1, bes1), jnp.float32),
        "bn2_b": jnp.zeros((1, bes1), jnp.float32),
        "bn2_m": jnp.zeros((1, bes1), jnp.float32),
        "bn2_v": jnp.ones((1, bes1), jnp.float32),
        # fc = Linear(bes, 512)
        "fc_w": (jax.random.normal(k3, (bes, num_features)) / jnp.sqrt(bes)).astype(jnp.float32),
        "fc_b": jnp.zeros((1, num_features), jnp.float32),
        # features = BatchNorm1d(512): weight frozen at 1.0
        "feat_w": jnp.ones((1, num_features), jnp.float32),
        "feat_b": jnp.zeros((1, num_features), jnp.float32),
        "feat_m": jnp.zeros((1, num_features), jnp.float32),
        "feat_v": jnp.ones((1, num_features), jnp.float32),
    }


def reference_forward(x_nchw, p):
    """Pure-JAX f32 reference mirroring the PyTorch forward (no folding)."""
    N, C_in, H, W = x_nchw.shape
    bes1 = p["w1"].shape[1]
    xcl = jnp.transpose(x_nchw, (0, 2, 3, 1)).astype(jnp.float32)          # (N,H,W,C)
    o1 = jnp.einsum("nhwc,ck->nhwk", xcl, p["w1"]) + p["b1"].reshape(1, 1, 1, -1)
    o2 = jnp.einsum("nhwc,ck->nhwk", xcl, p["w2"]) + p["b2"].reshape(1, 1, 1, -1)
    out = o1 + p["gamma"].reshape(()) * o2
    out = ((out - p["bn2_m"].reshape(1, 1, 1, -1))
           * jax.lax.rsqrt(p["bn2_v"].reshape(1, 1, 1, -1) + EPS)
           * p["bn2_w"].reshape(1, 1, 1, -1) + p["bn2_b"].reshape(1, 1, 1, -1))
    out_nchw = jnp.transpose(out, (0, 3, 1, 2))
    flat = out_nchw.reshape(N, -1)                                         # torch.flatten(x, 1)
    y = flat @ p["fc_w"] + p["fc_b"]
    y = (y - p["feat_m"]) * jax.lax.rsqrt(p["feat_v"] + EPS) * p["feat_w"] + p["feat_b"]
    return y


if __name__ == "__main__":
    key = jax.random.PRNGKey(0)
    kx, kp, kr = jax.random.split(key, 3)

    N, C_in, H, W = 2, 4, 16, 16     # input (NCHW)
    bes1 = 4                         # channels after net1/net2 (bes = bes1*H*W = 1024)

    x = jax.random.normal(kx, (N, C_in, H, W), dtype=jnp.float32)
    params = init_params(kp, C_in, bes1, H, W)

    # Perturb the module-default (degenerate) values so gamma, biases and BN stats
    # are all non-trivial and the algebraic folding is actually exercised.
    ks = jax.random.split(kr, 9)
    params["gamma"] = 0.5 * jax.random.normal(ks[0], (1, 1), jnp.float32)
    params["b1"] = 0.1 * jax.random.normal(ks[1], (1, bes1), jnp.float32)
    params["b2"] = 0.1 * jax.random.normal(ks[2], (1, bes1), jnp.float32)
    params["bn2_m"] = 0.1 * jax.random.normal(ks[3], (1, bes1), jnp.float32)
    params["bn2_v"] = jax.random.uniform(ks[4], (1, bes1), jnp.float32, 0.5, 1.5)
    params["bn2_b"] = 0.1 * jax.random.normal(ks[5], (1, bes1), jnp.float32)
    params["fc_b"] = 0.1 * jax.random.normal(ks[6], (1, 512), jnp.float32)
    params["feat_m"] = 0.1 * jax.random.normal(ks[7], (1, 512), jnp.float32)
    params["feat_v"] = jax.random.uniform(ks[8], (1, 512), jnp.float32, 0.5, 1.5)

    y = concatnet_forward(x, params)
    y = jax.block_until_ready(y)

    y_ref = reference_forward(x, params)
    assert y.shape == (N, 512) and y.dtype == jnp.float32
    assert bool(jnp.all(jnp.isfinite(y)))
    # bf16 MXU operands with f32 accumulation vs. pure-f32 reference.
    assert jnp.allclose(y, y_ref, atol=2e-2, rtol=2e-2), float(jnp.max(jnp.abs(y - y_ref)))

    print("KERNEL_OK")
</pallas_src>

<mosaic_0001>
module attributes {stable_mosaic.version = 11 : i64} {
  func.func @fused_kernel(%arg0: i32, %arg1: memref<4x4xf32, #tpu.memory_space<smem>>, %arg2: memref<8x1024xbf16, #tpu.memory_space<vmem>>, %arg3: memref<4x256x512xbf16, #tpu.memory_space<vmem>>, %arg4: memref<1x512xf32, #tpu.memory_space<vmem>>, %arg5: memref<8x512xf32, #tpu.memory_space<vmem>>) attributes {dimension_semantics = [#tpu.dimension_semantics<parallel>], iteration_bounds = array<i64: 1>, scalar_prefetch = 0 : i64, scratch_operands = 0 : i64, tpu.core_type = #tpu.core_type<tc>, window_params = [{transform_indices = @transform_0, window_bounds = array<i64: 4, 4>}, {transform_indices = @transform_1, window_bounds = array<i64: 8, 1024>}, {pipeline_mode = #tpu.pipeline_mode<synchronous>, transform_indices = @transform_2, window_bounds = array<i64: 4, 256, 512>}, {pipeline_mode = #tpu.pipeline_mode<synchronous>, transform_indices = @transform_3, window_bounds = array<i64: 1, 512>}, {transform_indices = @transform_4, window_bounds = array<i64: 8, 512>}]} {
    %cst = arith.constant 0.000000e+00 : f32
    %0 = vector.broadcast %cst : f32 to vector<8x512xf32>
    %cst_0 = arith.constant 0.000000e+00 : f32
    %1 = vector.broadcast %cst_0 : f32 to vector<8x256xf32>
    %c0 = arith.constant 0 : index
    %c0_1 = arith.constant 0 : index
    %2 = vector.load %arg2[%c0, %c0_1] : memref<8x1024xbf16, #tpu.memory_space<vmem>>, vector<8x256xbf16>
    %3 = arith.extf %2 : vector<8x256xbf16> to vector<8x256xf32>
    %c0_2 = arith.constant 0 : index
    %c0_3 = arith.constant 0 : index
    %4 = memref.load %arg1[%c0_2, %c0_3] : memref<4x4xf32, #tpu.memory_space<smem>>
    %5 = vector.broadcast %4 : f32 to vector<8x256xf32>
    %6 = arith.mulf %5, %3 : vector<8x256xf32>
    %7 = arith.addf %1, %6 : vector<8x256xf32>
    %c0_4 = arith.constant 0 : index
    %c256 = arith.constant 256 : index
    %8 = vector.load %arg2[%c0_4, %c256] : memref<8x1024xbf16, #tpu.memory_space<vmem>>, vector<8x256xbf16>
    %9 = arith.extf %8 : vector<8x256xbf16> to vector<8x256xf32>
    %c0_5 = arith.constant 0 : index
    %c1 = arith.constant 1 : index
    %10 = memref.load %arg1[%c0_5, %c1] : memref<4x4xf32, #tpu.memory_space<smem>>
    %11 = vector.broadcast %10 : f32 to vector<8x256xf32>
    %12 = arith.mulf %11, %9 : vector<8x256xf32>
    %13 = arith.addf %7, %12 : vector<8x256xf32>
    %c0_6 = arith.constant 0 : index
    %c512 = arith.constant 512 : index
    %14 = vector.load %arg2[%c0_6, %c512] : memref<8x1024xbf16, #tpu.memory_space<vmem>>, vector<8x256xbf16>
    %15 = arith.extf %14 : vector<8x256xbf16> to vector<8x256xf32>
    %c0_7 = arith.constant 0 : index
    %c2 = arith.constant 2 : index
    %16 = memref.load %arg1[%c0_7, %c2] : memref<4x4xf32, #tpu.memory_space<smem>>
    %17 = vector.broadcast %16 : f32 to vector<8x256xf32>
    %18 = arith.mulf %17, %15 : vector<8x256xf32>
    %19 = arith.addf %13, %18 : vector<8x256xf32>
    %c0_8 = arith.constant 0 : index
    %c768 = arith.constant 768 : index
    %20 = vector.load %arg2[%c0_8, %c768] : memref<8x1024xbf16, #tpu.memory_space<vmem>>, vector<8x256xbf16>
    %21 = arith.extf %20 : vector<8x256xbf16> to vector<8x256xf32>
    %c0_9 = arith.constant 0 : index
    %c3 = arith.constant 3 : index
    %22 = memref.load %arg1[%c0_9, %c3] : memref<4x4xf32, #tpu.memory_space<smem>>
    %23 = vector.broadcast %22 : f32 to vector<8x256xf32>
    %24 = arith.mulf %23, %21 : vector<8x256xf32>
    %25 = arith.addf %19, %24 : vector<8x256xf32>
    %26 = arith.truncf %25 : vector<8x256xf32> to vector<8x256xbf16>
    %c0_10 = arith.constant 0 : index
    %c0_11 = arith.constant 0 : index
    %c0_12 = arith.constant 0 : index
    %27 = vector.load %arg3[%c0_10, %c0_11, %c0_12] : memref<4x256x512xbf16, #tpu.memory_space<vmem>>, vector<1x256x512xbf16>
    %28 = vector.shape_cast %27 : vector<1x256x512xbf16> to vector<256x512xbf16>
    %cst_13 = arith.constant dense<0.000000e+00> : vector<8x512xf32>
    %29 = tpu.matmul %26, %28, %cst_13 {dimension_numbers = #tpu.dot_dimension_numbers<[1], [0], [0], [1], [0, 0, 1, 1], [], []>} : vector<8x256xbf16>, vector<256x512xbf16>, vector<8x512xf32> -> vector<8x512xf32>
    %30 = arith.addf %0, %29 : vector<8x512xf32>
    %cst_14 = arith.constant 0.000000e+00 : f32
    %31 = vector.broadcast %cst_14 : f32 to vector<8x256xf32>
    %c0_15 = arith.constant 0 : index
    %c0_16 = arith.constant 0 : index
    %32 = vector.load %arg2[%c0_15, %c0_16] : memref<8x1024xbf16, #tpu.memory_space<vmem>>, vector<8x256xbf16>
    %33 = arith.extf %32 : vector<8x256xbf16> to vector<8x256xf32>
    %c1_17 = arith.constant 1 : index
    %c0_18 = arith.constant 0 : index
    %34 = memref.load %arg1[%c1_17, %c0_18] : memref<4x4xf32, #tpu.memory_space<smem>>
    %35 = vector.broadcast %34 : f32 to vector<8x256xf32>
    %36 = arith.mulf %35, %33 : vector<8x256xf32>
    %37 = arith.addf %31, %36 : vector<8x256xf32>
    %c0_19 = arith.constant 0 : index
    %c256_20 = arith.constant 256 : index
    %38 = vector.load %arg2[%c0_19, %c256_20] : memref<8x1024xbf16, #tpu.memory_space<vmem>>, vector<8x256xbf16>
    %39 = arith.extf %38 : vector<8x256xbf16> to vector<8x256xf32>
    %c1_21 = arith.constant 1 : index
    %c1_22 = arith.constant 1 : index
    %40 = memref.load %arg1[%c1_21, %c1_22] : memref<4x4xf32, #tpu.memory_space<smem>>
    %41 = vector.broadcast %40 : f32 to vector<8x256xf32>
    %42 = arith.mulf %41, %39 : vector<8x256xf32>
    %43 = arith.addf %37, %42 : vector<8x256xf32>
    %c0_23 = arith.constant 0 : index
    %c512_24 = arith.constant 512 : index
    %44 = vector.load %arg2[%c0_23, %c512_24] : memref<8x1024xbf16, #tpu.memory_space<vmem>>, vector<8x256xbf16>
    %45 = arith.extf %44 : vector<8x256xbf16> to vector<8x256xf32>
    %c1_25 = arith.constant 1 : index
    %c2_26 = arith.constant 2 : index
    %46 = memref.load %arg1[%c1_25, %c2_26] : memref<4x4xf32, #tpu.memory_space<smem>>
    %47 = vector.broadcast %46 : f32 to vector<8x256xf32>
    %48 = arith.mulf %47, %45 : vector<8x256xf32>
    %49 = arith.addf %43, %48 : vector<8x256xf32>
    %c0_27 = arith.constant 0 : index
    %c768_28 = arith.constant 768 : index
    %50 = vector.load %arg2[%c0_27, %c768_28] : memref<8x1024xbf16, #tpu.memory_space<vmem>>, vector<8x256xbf16>
    %51 = arith.extf %50 : vector<8x256xbf16> to vector<8x256xf32>
    %c1_29 = arith.constant 1 : index
    %c3_30 = arith.constant 3 : index
    %52 = memref.load %arg1[%c1_29, %c3_30] : memref<4x4xf32, #tpu.memory_space<smem>>
    %53 = vector.broadcast %52 : f32 to vector<8x256xf32>
    %54 = arith.mulf %53, %51 : vector<8x256xf32>
    %55 = arith.addf %49, %54 : vector<8x256xf32>
    %56 = arith.truncf %55 : vector<8x256xf32> to vector<8x256xbf16>
    %c1_31 = arith.constant 1 : index
    %c0_32 = arith.constant 0 : index
    %c0_33 = arith.constant 0 : index
    %57 = vector.load %arg3[%c1_31, %c0_32, %c0_33] : memref<4x256x512xbf16, #tpu.memory_space<vmem>>, vector<1x256x512xbf16>
    %58 = vector.shape_cast %57 : vector<1x256x512xbf16> to vector<256x512xbf16>
    %cst_34 = arith.constant dense<0.000000e+00> : vector<8x512xf32>
    %59 = tpu.matmul %56, %58, %cst_34 {dimension_numbers = #tpu.dot_dimension_numbers<[1], [0], [0], [1], [0, 0, 1, 1], [], []>} : vector<8x256xbf16>, vector<256x512xbf16>, vector<8x512xf32> -> vector<8x512xf32>
    %60 = arith.addf %30, %59 : vector<8x512xf32>
    %cst_35 = arith.constant 0.000000e+00 : f32
    %61 = vector.broadcast %cst_35 : f32 to vector<8x256xf32>
    %c0_36 = arith.constant 0 : index
    %c0_37 = arith.constant 0 : index
    %62 = vector.load %arg2[%c0_36, %c0_37] : memref<8x1024xbf16, #tpu.memory_space<vmem>>, vector<8x256xbf16>
    %63 = arith.extf %62 : vector<8x256xbf16> to vector<8x256xf32>
    %c2_38 = arith.constant 2 : index
    %c0_39 = arith.constant 0 : index
    %64 = memref.load %arg1[%c2_38, %c0_39] : memref<4x4xf32, #tpu.memory_space<smem>>
    %65 = vector.broadcast %64 : f32 to vector<8x256xf32>
    %66 = arith.mulf %65, %63 : vector<8x256xf32>
    %67 = arith.addf %61, %66 : vector<8x256xf32>
    %c0_40 = arith.constant 0 : index
    %c256_41 = arith.constant 256 : index
    %68 = vector.load %arg2[%c0_40, %c256_41] : memref<8x1024xbf16, #tpu.memory_space<vmem>>, vector<8x256xbf16>
    %69 = arith.extf %68 : vector<8x256xbf16> to vector<8x256xf32>
    %c2_42 = arith.constant 2 : index
    %c1_43 = arith.constant 1 : index
    %70 = memref.load %arg1[%c2_42, %c1_43] : memref<4x4xf32, #tpu.memory_space<smem>>
    %71 = vector.broadcast %70 : f32 to vector<8x256xf32>
    %72 = arith.mulf %71, %69 : vector<8x256xf32>
    %73 = arith.addf %67, %72 : vector<8x256xf32>
    %c0_44 = arith.constant 0 : index
    %c512_45 = arith.constant 512 : index
    %74 = vector.load %arg2[%c0_44, %c512_45] : memref<8x1024xbf16, #tpu.memory_space<vmem>>, vector<8x256xbf16>
    %75 = arith.extf %74 : vector<8x256xbf16> to vector<8x256xf32>
    %c2_46 = arith.constant 2 : index
    %c2_47 = arith.constant 2 : index
    %76 = memref.load %arg1[%c2_46, %c2_47] : memref<4x4xf32, #tpu.memory_space<smem>>
    %77 = vector.broadcast %76 : f32 to vector<8x256xf32>
    %78 = arith.mulf %77, %75 : vector<8x256xf32>
    %79 = arith.addf %73, %78 : vector<8x256xf32>
    %c0_48 = arith.constant 0 : index
    %c768_49 = arith.constant 768 : index
    %80 = vector.load %arg2[%c0_48, %c768_49] : memref<8x1024xbf16, #tpu.memory_space<vmem>>, vector<8x256xbf16>
    %81 = arith.extf %80 : vector<8x256xbf16> to vector<8x256xf32>
    %c2_50 = arith.constant 2 : index
    %c3_51 = arith.constant 3 : index
    %82 = memref.load %arg1[%c2_50, %c3_51] : memref<4x4xf32, #tpu.memory_space<smem>>
    %83 = vector.broadcast %82 : f32 to vector<8x256xf32>
    %84 = arith.mulf %83, %81 : vector<8x256xf32>
    %85 = arith.addf %79, %84 : vector<8x256xf32>
    %86 = arith.truncf %85 : vector<8x256xf32> to vector<8x256xbf16>
    %c2_52 = arith.constant 2 : index
    %c0_53 = arith.constant 0 : index
    %c0_54 = arith.constant 0 : index
    %87 = vector.load %arg3[%c2_52, %c0_53, %c0_54] : memref<4x256x512xbf16, #tpu.memory_space<vmem>>, vector<1x256x512xbf16>
    %88 = vector.shape_cast %87 : vector<1x256x512xbf16> to vector<256x512xbf16>
    %cst_55 = arith.constant dense<0.000000e+00> : vector<8x512xf32>
    %89 = tpu.matmul %86, %88, %cst_55 {dimension_numbers = #tpu.dot_dimension_numbers<[1], [0], [0], [1], [0, 0, 1, 1], [], []>} : vector<8x256xbf16>, vector<256x512xbf16>, vector<8x512xf32> -> vector<8x512xf32>
    %90 = arith.addf %60, %89 : vector<8x512xf32>
    %cst_56 = arith.constant 0.000000e+00 : f32
    %91 = vector.broadcast %cst_56 : f32 to vector<8x256xf32>
    %c0_57 = arith.constant 0 : index
    %c0_58 = arith.constant 0 : index
    %92 = vector.load %arg2[%c0_57, %c0_58] : memref<8x1024xbf16, #tpu.memory_space<vmem>>, vector<8x256xbf16>
    %93 = arith.extf %92 : vector<8x256xbf16> to vector<8x256xf32>
    %c3_59 = arith.constant 3 : index
    %c0_60 = arith.constant 0 : index
    %94 = memref.load %arg1[%c3_59, %c0_60] : memref<4x4xf32, #tpu.memory_space<smem>>
    %95 = vector.broadcast %94 : f32 to vector<8x256xf32>
    %96 = arith.mulf %95, %93 : vector<8x256xf32>
    %97 = arith.addf %91, %96 : vector<8x256xf32>
    %c0_61 = arith.constant 0 : index
    %c256_62 = arith.constant 256 : index
    %98 = vector.load %arg2[%c0_61, %c256_62] : memref<8x1024xbf16, #tpu.memory_space<vmem>>, vector<8x256xbf16>
    %99 = arith.extf %98 : vector<8x256xbf16> to vector<8x256xf32>
    %c3_63 = arith.constant 3 : index
    %c1_64 = arith.constant 1 : index
    %100 = memref.load %arg1[%c3_63, %c1_64] : memref<4x4xf32, #tpu.memory_space<smem>>
    %101 = vector.broadcast %100 : f32 to vector<8x256xf32>
    %102 = arith.mulf %101, %99 : vector<8x256xf32>
    %103 = arith.addf %97, %102 : vector<8x256xf32>
    %c0_65 = arith.constant 0 : index
    %c512_66 = arith.constant 512 : index
    %104 = vector.load %arg2[%c0_65, %c512_66] : memref<8x1024xbf16, #tpu.memory_space<vmem>>, vector<8x256xbf16>
    %105 = arith.extf %104 : vector<8x256xbf16> to vector<8x256xf32>
    %c3_67 = arith.constant 3 : index
    %c2_68 = arith.constant 2 : index
    %106 = memref.load %arg1[%c3_67, %c2_68] : memref<4x4xf32, #tpu.memory_space<smem>>
    %107 = vector.broadcast %106 : f32 to vector<8x256xf32>
    %108 = arith.mulf %107, %105 : vector<8x256xf32>
    %109 = arith.addf %103, %108 : vector<8x256xf32>
    %c0_69 = arith.constant 0 : index
    %c768_70 = arith.constant 768 : index
    %110 = vector.load %arg2[%c0_69, %c768_70] : memref<8x1024xbf16, #tpu.memory_space<vmem>>, vector<8x256xbf16>
    %111 = arith.extf %110 : vector<8x256xbf16> to vector<8x256xf32>
    %c3_71 = arith.constant 3 : index
    %c3_72 = arith.constant 3 : index
    %112 = memref.load %arg1[%c3_71, %c3_72] : memref<4x4xf32, #tpu.memory_space<smem>>
    %113 = vector.broadcast %112 : f32 to vector<8x256xf32>
    %114 = arith.mulf %113, %111 : vector<8x256xf32>
    %115 = arith.addf %109, %114 : vector<8x256xf32>
    %116 = arith.truncf %115 : vector<8x256xf32> to vector<8x256xbf16>
    %c3_73 = arith.constant 3 : index
    %c0_74 = arith.constant 0 : index
    %c0_75 = arith.constant 0 : index
    %117 = vector.load %arg3[%c3_73, %c0_74, %c0_75] : memref<4x256x512xbf16, #tpu.memory_space<vmem>>, vector<1x256x512xbf16>
    %118 = vector.shape_cast %117 : vector<1x256x512xbf16> to vector<256x512xbf16>
    %cst_76 = arith.constant dense<0.000000e+00> : vector<8x512xf32>
    %119 = tpu.matmul %116, %118, %cst_76 {dimension_numbers = #tpu.dot_dimension_numbers<[1], [0], [0], [1], [0, 0, 1, 1], [], []>} : vector<8x256xbf16>, vector<256x512xbf16>, vector<8x512xf32> -> vector<8x512xf32>
    %120 = arith.addf %90, %119 : vector<8x512xf32>
    %c0_77 = arith.constant 0 : index
    %c0_78 = arith.constant 0 : index
    %121 = vector.load %arg4[%c0_77, %c0_78] : memref<1x512xf32, #tpu.memory_space<vmem>>, vector<1x512xf32>
    %122 = vector.broadcast %121 : vector<1x512xf32> to vector<8x512xf32>
    %123 = arith.addf %120, %122 : vector<8x512xf32>
    %c0_79 = arith.constant 0 : index
    %c0_80 = arith.constant 0 : index
    %124 = vector.load %arg5[%c0_79, %c0_80] : memref<8x512xf32, #tpu.memory_space<vmem>>, vector<8x512xf32>
    tpu.vector_store %arg5[%c0_79, %c0_80], %123 {strides = array<i32>} : memref<8x512xf32, #tpu.memory_space<vmem>>, vector<8x512xf32>,
    return
  }
  func.func @transform_0(%arg0: i32) -> (i32, i32) {
    %c0_i32 = arith.constant 0 : i32
    %c0_i32_0 = arith.constant 0 : i32
    %c0_i32_1 = arith.constant 0 : i32
    return %c0_i32, %c0_i32_0 : i32, i32
  }
  func.func @transform_1(%arg0: i32) -> (i32, i32) {
    %c0_i32 = arith.constant 0 : i32
    %c0_i32_0 = arith.constant 0 : i32
    return %arg0, %c0_i32 : i32, i32
  }
  func.func @transform_2(%arg0: i32) -> (i32, i32, i32) {
    %c0_i32 = arith.constant 0 : i32
    %c0_i32_0 = arith.constant 0 : i32
    %c0_i32_1 = arith.constant 0 : i32
    %c0_i32_2 = arith.constant 0 : i32
    return %c0_i32, %c0_i32_0, %c0_i32_1 : i32, i32, i32
  }
  func.func @transform_3(%arg0: i32) -> (i32, i32) {
    %c0_i32 = arith.constant 0 : i32
    %c0_i32_0 = arith.constant 0 : i32
    %c0_i32_1 = arith.constant 0 : i32
    return %c0_i32, %c0_i32_0 : i32, i32
  }
  func.func @transform_4(%arg0: i32) -> (i32, i32) {
    %c0_i32 = arith.constant 0 : i32
    %c0_i32_0 = arith.constant 0 : i32
    return %arg0, %c0_i32 : i32, i32
  }
}

</mosaic_0001>

<llo_original>
// kernel: concatnet_forward.1
$region0: #{concatnet_forward.1}
  #allocation0 [shape = 'u32[]', space=smem, size = 0x4, offset = 0x4, fixed_abs, tag = 'smem constant byte address 0x4 - core index']
  #allocation1 [shape = 'u32[144,128]{1,0:T(1,128)}', space=vmem, size = 0x12000, scoped, tag = 'internal scratch']
  %s0 = inlined_call_operand.vmem [shape: f32[4,4], index: 0, kind: input, shape index: {}]
  %s1 = inlined_call_operand.vmem [shape: bf16[8,1024], index: 1, kind: input, shape index: {}]
  %s2 = inlined_call_operand.vmem [shape: bf16[4,256,512], index: 2, kind: input, shape index: {}]
  %s3 = inlined_call_operand.vmem [shape: f32[1,512], index: 3, kind: input, shape index: {}]
  %s4 = inlined_call_operand.vmem [shape: f32[8,512], index: 4, kind: output, shape index: {}]
  %s5 = sld [smem:[#allocation0]]
  $region30: #{concatnet_forward.1} parent=0
    _
  %s7 = ssub.s32 1, %s5
  %s8 = scalar_select 0, %s7, %s5
  $region1: #{concatnet_forward.1} parent=0
    #allocation2 [shape = 'u8[2048]{0}', space=smem, size = 0x800, scoped, tag = 'input window, operand 0, single buffered']
    #allocation3 [shape = 's32[1]{0}', space=sflag, size = 0x4, scoped, tag = 'scoped memory for concatnet_forward.1']
    %9 = vsyncpa [#allocation3], 0
    // Predicated region
    $region2: #{concatnet_forward.1} parent=1 // pred_check
      _
    $region3: #{concatnet_forward.1} parent=1 // pred_check_branch
      %11 = sbr.rel (0) target = $region5
    $region4: #{concatnet_forward.1} parent=1 // pred_region
      %s13 = ssub.s32 64, 64
      %14 = vsyncadd [#allocation3], %s13
      %s16 = sshll.u32 %s0, 4
      %s17 = int_to_ptr.vmem [resolvable:$true] %s16
      %19 = dma.vmem_to_smem %s17, 64, [#allocation2], [#allocation3]
    $region5: #{concatnet_forward.1} parent=1 // pred_fallthru
      _
    // Predicated region
    $region6: #{concatnet_forward.1} parent=1 // pred_check
      _
    $region7: #{concatnet_forward.1} parent=1 // pred_check_branch
      %21 = sbr.rel (0) target = $region9
    $region8: #{concatnet_forward.1} parent=1 // pred_region
      _
    $region9: #{concatnet_forward.1} parent=1 // pred_fallthru
      _
    // Predicated region
    $region10: #{concatnet_forward.1} parent=1 // pred_check
      _
    $region11: #{concatnet_forward.1} parent=1 // pred_check_branch
      %23 = sbr.rel (0) target = $region13
    $region12: #{concatnet_forward.1} parent=1 // pred_region
      _
    $region13: #{concatnet_forward.1} parent=1 // pred_fallthru
      _
    // Predicated region
    $region14: #{concatnet_forward.1} parent=1 // pred_check
      _
    $region15: #{concatnet_forward.1} parent=1 // pred_check_branch
      %25 = sbr.rel (0) target = $region17
    $region16: #{concatnet_forward.1} parent=1 // pred_region
      _
    $region17: #{concatnet_forward.1} parent=1 // pred_fallthru
      _
    // Predicated region
    $region18: #{concatnet_forward.1} parent=1 // pred_check
      _
    $region19: #{concatnet_forward.1} parent=1 // pred_check_branch
      %27 = sbr.rel (0) target = $region21
    $region20: #{concatnet_forward.1} parent=1 // pred_region
      %28 = dma.done [#allocation3], 64
    $region21: #{concatnet_forward.1} parent=1 // pred_fallthru
      _
    %29 = sfence
    %v30 = vld [vmem:[%s1] sm:$0xff]
    %v31 = vunpack.c.l.bf16 %v30
    %v32 = vunpack.c.h.bf16 %v30
    %s33 = sld [smem:[#allocation2]]
    %v34 = vstv %s33
    %v35 = vmul.f32 %v34, %v31
    %v36 = vmul.f32 %v34, %v32
    %v37 = vadd.f32 %v35, 0.0
    %v38 = vadd.f32 %v36, 0.0
    %v39 = vld [vmem:[%s1 + $0x8] sm:$0xff]
    %v40 = vunpack.c.l.bf16 %v39
    %v41 = vunpack.c.h.bf16 %v39
    %s42 = sld [smem:[#allocation2 + $0x1]]
    %v43 = vstv %s42
    %v44 = vmul.f32 %v43, %v40
    %v45 = vmul.f32 %v43, %v41
    %v46 = vadd.f32 %v37, %v44
    %v47 = vadd.f32 %v38, %v45
    %v48 = vld [vmem:[%s1 + $0x10] sm:$0xff]
    %v49 = vunpack.c.l.bf16 %v48
    %v50 = vunpack.c.h.bf16 %v48
    %s51 = sld [smem:[#allocation2 + $0x2]]
    %v52 = vstv %s51
    %v53 = vmul.f32 %v52, %v49
    %v54 = vmul.f32 %v52, %v50
    %v55 = vadd.f32 %v46, %v53
    %v56 = vadd.f32 %v47, %v54
    %v57 = vld [vmem:[%s1 + $0x18] sm:$0xff]
    %v58 = vunpack.c.l.bf16 %v57
    %v59 = vunpack.c.h.bf16 %v57
    %s60 = sld [smem:[#allocation2 + $0x3]]
    %v61 = vstv %s60
    %v62 = vmul.f32 %v61, %v58
    %v63 = vmul.f32 %v61, %v59
    %v64 = vadd.f32 %v55, %v62
    %v65 = vadd.f32 %v56, %v63
    %v66 = vpack.c.bf16 %v64, %v64
    %v67 = vpack.c.bf16 %v65, %v65
    %v68 = vld [vmem:[%s2] sm:$0xff]
    %v69 = vld [vmem:[%s2 + $0x8] sm:$0xff]
    %v70 = vld [vmem:[%s2 + $0x10] sm:$0xff]
    %v71 = vld [vmem:[%s2 + $0x18] sm:$0xff]
    %v72 = vld [vmem:[%s2 + $0x20] sm:$0xff]
    %v73 = vld [vmem:[%s2 + $0x28] sm:$0xff]
    %v74 = vld [vmem:[%s2 + $0x30] sm:$0xff]
    %v75 = vld [vmem:[%s2 + $0x38] sm:$0xff]
    %v76 = vld [vmem:[%s2 + $0x40] sm:$0xff]
    %v77 = vld [vmem:[%s2 + $0x48] sm:$0xff]
    %v78 = vld [vmem:[%s2 + $0x50] sm:$0xff]
    %v79 = vld [vmem:[%s2 + $0x58] sm:$0xff]
    %v80 = vld [vmem:[%s2 + $0x60] sm:$0xff]
    %v81 = vld [vmem:[%s2 + $0x68] sm:$0xff]
    %v82 = vld [vmem:[%s2 + $0x70] sm:$0xff]
    %v83 = vld [vmem:[%s2 + $0x78] sm:$0xff]
    %v84 = vld [vmem:[%s2 + $0x80] sm:$0xff]
    %v85 = vld [vmem:[%s2 + $0x88] sm:$0xff]
    %v86 = vld [vmem:[%s2 + $0x90] sm:$0xff]
    %v87 = vld [vmem:[%s2 + $0x98] sm:$0xff]
    %v88 = vld [vmem:[%s2 + $0xa0] sm:$0xff]
    %v89 = vld [vmem:[%s2 + $0xa8] sm:$0xff]
    %v90 = vld [vmem:[%s2 + $0xb0] sm:$0xff]
    %v91 = vld [vmem:[%s2 + $0xb8] sm:$0xff]
    %v92 = vld [vmem:[%s2 + $0xc0] sm:$0xff]
    %v93 = vld [vmem:[%s2 + $0xc8] sm:$0xff]
    %v94 = vld [vmem:[%s2 + $0xd0] sm:$0xff]
    %v95 = vld [vmem:[%s2 + $0xd8] sm:$0xff]
    %v96 = vld [vmem:[%s2 + $0xe0] sm:$0xff]
    %v97 = vld [vmem:[%s2 + $0xe8] sm:$0xff]
    %v98 = vld [vmem:[%s2 + $0xf0] sm:$0xff]
    %v99 = vld [vmem:[%s2 + $0xf8] sm:$0xff]
    %v100 = vld [vmem:[%s2 + $0x100] sm:$0xff]
    %v101 = vld [vmem:[%s2 + $0x108] sm:$0xff]
    %v102 = vld [vmem:[%s2 + $0x110] sm:$0xff]
    %v103 = vld [vmem:[%s2 + $0x118] sm:$0xff]
    %v104 = vld [vmem:[%s2 + $0x120] sm:$0xff]
    %v105 = vld [vmem:[%s2 + $0x128] sm:$0xff]
    %v106 = vld [vmem:[%s2 + $0x130] sm:$0xff]
    %v107 = vld [vmem:[%s2 + $0x138] sm:$0xff]
    %v108 = vld [vmem:[%s2 + $0x140] sm:$0xff]
    %v109 = vld [vmem:[%s2 + $0x148] sm:$0xff]
    %v110 = vld [vmem:[%s2 + $0x150] sm:$0xff]
    %v111 = vld [vmem:[%s2 + $0x158] sm:$0xff]
    %v112 = vld [vmem:[%s2 + $0x160] sm:$0xff]
    %v113 = vld [vmem:[%s2 + $0x168] sm:$0xff]
    %v114 = vld [vmem:[%s2 + $0x170] sm:$0xff]
    %v115 = vld [vmem:[%s2 + $0x178] sm:$0xff]
    %v116 = vld [vmem:[%s2 + $0x180] sm:$0xff]
    %v117 = vld [vmem:[%s2 + $0x188] sm:$0xff]
    %v118 = vld [vmem:[%s2 + $0x190] sm:$0xff]
    %v119 = vld [vmem:[%s2 + $0x198] sm:$0xff]
    %v120 = vld [vmem:[%s2 + $0x1a0] sm:$0xff]
    %v121 = vld [vmem:[%s2 + $0x1a8] sm:$0xff]
    %v122 = vld [vmem:[%s2 + $0x1b0] sm:$0xff]
    %v123 = vld [vmem:[%s2 + $0x1b8] sm:$0xff]
    %v124 = vld [vmem:[%s2 + $0x1c0] sm:$0xff]
    %v125 = vld [vmem:[%s2 + $0x1c8] sm:$0xff]
    %v126 = vld [vmem:[%s2 + $0x1d0] sm:$0xff]
    %v127 = vld [vmem:[%s2 + $0x1d8] sm:$0xff]
    %v128 = vld [vmem:[%s2 + $0x1e0] sm:$0xff]
    %v129 = vld [vmem:[%s2 + $0x1e8] sm:$0xff]
    %v130 = vld [vmem:[%s2 + $0x1f0] sm:$0xff]
    %v131 = vld [vmem:[%s2 + $0x1f8] sm:$0xff]
    %s132 = sld [smem:[#allocation2 + $0x80]]
    %v133 = vstv %s132
    %v134 = vmul.f32 %v133, %v31
    %v135 = vmul.f32 %v133, %v32
    %v136 = vadd.f32 %v134, 0.0
    %v137 = vadd.f32 %v135, 0.0
    %s138 = sld [smem:[#allocation2 + $0x81]]
    %v139 = vstv %s138
    %v140 = vmul.f32 %v139, %v40
    %v141 = vmul.f32 %v139, %v41
    %v142 = vadd.f32 %v136, %v140
    %v143 = vadd.f32 %v137, %v141
    %s144 = sld [smem:[#allocation2 + $0x82]]
    %v145 = vstv %s144
    %v146 = vmul.f32 %v145, %v49
    %v147 = vmul.f32 %v145, %v50
    %v148 = vadd.f32 %v142, %v146
    %v149 = vadd.f32 %v143, %v147
    %s150 = sld [smem:[#allocation2 + $0x83]]
    %v151 = vstv %s150
    %v152 = vmul.f32 %v151, %v58
    %v153 = vmul.f32 %v151, %v59
    %v154 = vadd.f32 %v148, %v152
    %v155 = vadd.f32 %v149, %v153
    %v156 = vpack.c.bf16 %v154, %v154
    %v157 = vpack.c.bf16 %v155, %v155
    %s158 = scalar_lea.vmem %s2, 512
    %v159 = vld [vmem:[%s158] sm:$0xff]
    %v160 = vld [vmem:[%s158 + $0x8] sm:$0xff]
    %v161 = vld [vmem:[%s158 + $0x10] sm:$0xff]
    %v162 = vld [vmem:[%s158 + $0x18] sm:$0xff]
    %v163 = vld [vmem:[%s158 + $0x20] sm:$0xff]
    %v164 = vld [vmem:[%s158 + $0x28] sm:$0xff]
    %v165 = vld [vmem:[%s158 + $0x30] sm:$0xff]
    %v166 = vld [vmem:[%s158 + $0x38] sm:$0xff]
    %v167 = vld [vmem:[%s158 + $0x40] sm:$0xff]
    %v168 = vld [vmem:[%s158 + $0x48] sm:$0xff]
    %v169 = vld [vmem:[%s158 + $0x50] sm:$0xff]
    %v170 = vld [vmem:[%s158 + $0x58] sm:$0xff]
    %v171 = vld [vmem:[%s158 + $0x60] sm:$0xff]
    %v172 = vld [vmem:[%s158 + $0x68] sm:$0xff]
    %v173 = vld [vmem:[%s158 + $0x70] sm:$0xff]
    %v174 = vld [vmem:[%s158 + $0x78] sm:$0xff]
    %v175 = vld [vmem:[%s158 + $0x80] sm:$0xff]
    %v176 = vld [vmem:[%s158 + $0x88] sm:$0xff]
    %v177 = vld [vmem:[%s158 + $0x90] sm:$0xff]
    %v178 = vld [vmem:[%s158 + $0x98] sm:$0xff]
    %v179 = vld [vmem:[%s158 + $0xa0] sm:$0xff]
    %v180 = vld [vmem:[%s158 + $0xa8] sm:$0xff]
    %v181 = vld [vmem:[%s158 + $0xb0] sm:$0xff]
    %v182 = vld [vmem:[%s158 + $0xb8] sm:$0xff]
    %v183 = vld [vmem:[%s158 + $0xc0] sm:$0xff]
    %v184 = vld [vmem:[%s158 + $0xc8] sm:$0xff]
    %v185 = vld [vmem:[%s158 + $0xd0] sm:$0xff]
    %v186 = vld [vmem:[%s158 + $0xd8] sm:$0xff]
    %v187 = vld [vmem:[%s158 + $0xe0] sm:$0xff]
    %v188 = vld [vmem:[%s158 + $0xe8] sm:$0xff]
    %v189 = vld [vmem:[%s158 + $0xf0] sm:$0xff]
    %v190 = vld [vmem:[%s158 + $0xf8] sm:$0xff]
    %v191 = vld [vmem:[%s158 + $0x100] sm:$0xff]
    %v192 = vld [vmem:[%s158 + $0x108] sm:$0xff]
    %v193 = vld [vmem:[%s158 + $0x110] sm:$0xff]
    %v194 = vld [vmem:[%s158 + $0x118] sm:$0xff]
    %v195 = vld [vmem:[%s158 + $0x120] sm:$0xff]
    %v196 = vld [vmem:[%s158 + $0x128] sm:$0xff]
    %v197 = vld [vmem:[%s158 + $0x130] sm:$0xff]
    %v198 = vld [vmem:[%s158 + $0x138] sm:$0xff]
    %v199 = vld [vmem:[%s158 + $0x140] sm:$0xff]
    %v200 = vld [vmem:[%s158 + $0x148] sm:$0xff]
    %v201 = vld [vmem:[%s158 + $0x150] sm:$0xff]
    %v202 = vld [vmem:[%s158 + $0x158] sm:$0xff]
    %v203 = vld [vmem:[%s158 + $0x160] sm:$0xff]
    %v204 = vld [vmem:[%s158 + $0x168] sm:$0xff]
    %v205 = vld [vmem:[%s158 + $0x170] sm:$0xff]
    %v206 = vld [vmem:[%s158 + $0x178] sm:$0xff]
    %v207 = vld [vmem:[%s158 + $0x180] sm:$0xff]
    %v208 = vld [vmem:[%s158 + $0x188] sm:$0xff]
    %v209 = vld [vmem:[%s158 + $0x190] sm:$0xff]
    %v210 = vld [vmem:[%s158 + $0x198] sm:$0xff]
    %v211 = vld [vmem:[%s158 + $0x1a0] sm:$0xff]
    %v212 = vld [vmem:[%s158 + $0x1a8] sm:$0xff]
    %v213 = vld [vmem:[%s158 + $0x1b0] sm:$0xff]
    %v214 = vld [vmem:[%s158 + $0x1b8] sm:$0xff]
    %v215 = vld [vmem:[%s158 + $0x1c0] sm:$0xff]
    %v216 = vld [vmem:[%s158 + $0x1c8] sm:$0xff]
    %v217 = vld [vmem:[%s158 + $0x1d0] sm:$0xff]
    %v218 = vld [vmem:[%s158 + $0x1d8] sm:$0xff]
    %v219 = vld [vmem:[%s158 + $0x1e0] sm:$0xff]
    %v220 = vld [vmem:[%s158 + $0x1e8] sm:$0xff]
    %v221 = vld [vmem:[%s158 + $0x1f0] sm:$0xff]
    %v222 = vld [vmem:[%s158 + $0x1f8] sm:$0xff]
    %v287 = vunpack.c.l.b16 %v159
    %v288 = vunpack.c.h.b16 %v159
    %v289 = vunpack.c.l.b16 %v160
    %v290 = vunpack.c.h.b16 %v160
    %v291 = vunpack.c.l.b16 %v161
    %v292 = vunpack.c.h.b16 %v161
    %v293 = vunpack.c.l.b16 %v162
    %v294 = vunpack.c.h.b16 %v162
    %v295 = vunpack.c.l.b16 %v163
    %v296 = vunpack.c.h.b16 %v163
    %v297 = vunpack.c.l.b16 %v164
    %v298 = vunpack.c.h.b16 %v164
    %v299 = vunpack.c.l.b16 %v165
    %v300 = vunpack.c.h.b16 %v165
    %v301 = vunpack.c.l.b16 %v166
    %v302 = vunpack.c.h.b16 %v166
    %v303 = vunpack.c.l.b16 %v167
    %v304 = vunpack.c.h.b16 %v167
    %v305 = vunpack.c.l.b16 %v168
    %v306 = vunpack.c.h.b16 %v168
    %v307 = vunpack.c.l.b16 %v169
    %v308 = vunpack.c.h.b16 %v169
    %v309 = vunpack.c.l.b16 %v170
    %v310 = vunpack.c.h.b16 %v170
    %v311 = vunpack.c.l.b16 %v171
    %v312 = vunpack.c.h.b16 %v171
    %v313 = vunpack.c.l.b16 %v172
    %v314 = vunpack.c.h.b16 %v172
    %v315 = vunpack.c.l.b16 %v173
    %v316 = vunpack.c.h.b16 %v173
    %v317 = vunpack.c.l.b16 %v174
    %v318 = vunpack.c.h.b16 %v174
    %v319 = vunpack.c.l.b16 %v175
    %v320 = vunpack.c.h.b16 %v175
    %v321 = vunpack.c.l.b16 %v176
    %v322 = vunpack.c.h.b16 %v176
    %v323 = vunpack.c.l.b16 %v177
    %v324 = vunpack.c.h.b16 %v177
    %v325 = vunpack.c.l.b16 %v178
    %v326 = vunpack.c.h.b16 %v178
    %v327 = vunpack.c.l.b16 %v179
    %v328 = vunpack.c.h.b16 %v179
    %v329 = vunpack.c.l.b16 %v180
    %v330 = vunpack.c.h.b16 %v180
    %v331 = vunpack.c.l.b16 %v181
    %v332 = vunpack.c.h.b16 %v181
    %v333 = vunpack.c.l.b16 %v182
    %v334 = vunpack.c.h.b16 %v182
    %v335 = vunpack.c.l.b16 %v183
    %v336 = vunpack.c.h.b16 %v183
    %v337 = vunpack.c.l.b16 %v184
    %v338 = vunpack.c.h.b16 %v184
    %v339 = vunpack.c.l.b16 %v185
    %v340 = vunpack.c.h.b16 %v185
    %v341 = vunpack.c.l.b16 %v186
    %v342 = vunpack.c.h.b16 %v186
    %v343 = vunpack.c.l.b16 %v187
    %v344 = vunpack.c.h.b16 %v187
    %v345 = vunpack.c.l.b16 %v188
    %v346 = vunpack.c.h.b16 %v188
    %v347 = vunpack.c.l.b16 %v189
    %v348 = vunpack.c.h.b16 %v189
    %v349 = vunpack.c.l.b16 %v190
    %v350 = vunpack.c.h.b16 %v190
    %v351 = vunpack.c.l.b16 %v191
    %v352 = vunpack.c.h.b16 %v191
    %v353 = vunpack.c.l.b16 %v192
    %v354 = vunpack.c.h.b16 %v192
    %v355 = vunpack.c.l.b16 %v193
    %v356 = vunpack.c.h.b16 %v193
    %v357 = vunpack.c.l.b16 %v194
    %v358 = vunpack.c.h.b16 %v194
    %v359 = vunpack.c.l.b16 %v195
    %v360 = vunpack.c.h.b16 %v195
    %v361 = vunpack.c.l.b16 %v196
    %v362 = vunpack.c.h.b16 %v196
    %v363 = vunpack.c.l.b16 %v197
    %v364 = vunpack.c.h.b16 %v197
    %v365 = vunpack.c.l.b16 %v198
    %v366 = vunpack.c.h.b16 %v198
    %v367 = vunpack.c.l.b16 %v199
    %v368 = vunpack.c.h.b16 %v199
    %v369 = vunpack.c.l.b16 %v200
    %v370 = vunpack.c.h.b16 %v200
    %v371 = vunpack.c.l.b16 %v201
    %v372 = vunpack.c.h.b16 %v201
    %v373 = vunpack.c.l.b16 %v202
    %v374 = vunpack.c.h.b16 %v202
    %v375 = vunpack.c.l.b16 %v203
    %v376 = vunpack.c.h.b16 %v203
    %v377 = vunpack.c.l.b16 %v204
    %v378 = vunpack.c.h.b16 %v204
    %v379 = vunpack.c.l.b16 %v205
    %v380 = vunpack.c.h.b16 %v205
    %v381 = vunpack.c.l.b16 %v206
    %v382 = vunpack.c.h.b16 %v206
    %v383 = vunpack.c.l.b16 %v207
    %v384 = vunpack.c.h.b16 %v207
    %v385 = vunpack.c.l.b16 %v208
    %v386 = vunpack.c.h.b16 %v208
    %v387 = vunpack.c.l.b16 %v209
    %v388 = vunpack.c.h.b16 %v209
    %v389 = vunpack.c.l.b16 %v210
    %v390 = vunpack.c.h.b16 %v210
    %v391 = vunpack.c.l.b16 %v211
    %v392 = vunpack.c.h.b16 %v211
    %v393 = vunpack.c.l.b16 %v212
    %v394 = vunpack.c.h.b16 %v212
    %v395 = vunpack.c.l.b16 %v213
    %v396 = vunpack.c.h.b16 %v213
    %v397 = vunpack.c.l.b16 %v214
    %v398 = vunpack.c.h.b16 %v214
    %v399 = vunpack.c.l.b16 %v215
    %v400 = vunpack.c.h.b16 %v215
    %v401 = vunpack.c.l.b16 %v216
    %v402 = vunpack.c.h.b16 %v216
    %v403 = vunpack.c.l.b16 %v217
    %v404 = vunpack.c.h.b16 %v217
    %v405 = vunpack.c.l.b16 %v218
    %v406 = vunpack.c.h.b16 %v218
    %v407 = vunpack.c.l.b16 %v219
    %v408 = vunpack.c.h.b16 %v219
    %v409 = vunpack.c.l.b16 %v220
    %v410 = vunpack.c.h.b16 %v220
    %v411 = vunpack.c.l.b16 %v221
    %v412 = vunpack.c.h.b16 %v221
    %v413 = vunpack.c.l.b16 %v222
    %v414 = vunpack.c.h.b16 %v222
    %v415 = vpack.c.b16 %v291, %v287
    %v416 = vpack.c.b16 %v292, %v288
    %v417 = vpack.c.b16 %v293, %v289
    %v418 = vpack.c.b16 %v294, %v290
    %v419 = vpack.c.b16 %v299, %v295
    %v420 = vpack.c.b16 %v300, %v296
    %v421 = vpack.c.b16 %v301, %v297
    %v422 = vpack.c.b16 %v302, %v298
    %v423 = vpack.c.b16 %v307, %v303
    %v424 = vpack.c.b16 %v308, %v304
    %v425 = vpack.c.b16 %v309, %v305
    %v426 = vpack.c.b16 %v310, %v306
    %v427 = vpack.c.b16 %v315, %v311
    %v428 = vpack.c.b16 %v316, %v312
    %v429 = vpack.c.b16 %v317, %v313
    %v430 = vpack.c.b16 %v318, %v314
    %v431 = vpack.c.b16 %v323, %v319
    %v432 = vpack.c.b16 %v324, %v320
    %v433 = vpack.c.b16 %v325, %v321
    %v434 = vpack.c.b16 %v326, %v322
    %v435 = vpack.c.b16 %v331, %v327
    %v436 = vpack.c.b16 %v332, %v328
    %v437 = vpack.c.b16 %v333, %v329
    %v438 = vpack.c.b16 %v334, %v330
    %v439 = vpack.c.b16 %v339, %v335
    %v440 = vpack.c.b16 %v340, %v336
    %v441 = vpack.c.b16 %v341, %v337
    %v442 = vpack.c.b16 %v342, %v338
    %v443 = vpack.c.b16 %v347, %v343
    %v444 = vpack.c.b16 %v348, %v344
    %v445 = vpack.c.b16 %v349, %v345
    %v446 = vpack.c.b16 %v350, %v346
    %v447 = vpack.c.b16 %v355, %v351
    %v448 = vpack.c.b16 %v356, %v352
    %v449 = vpack.c.b16 %v357, %v353
    %v450 = vpack.c.b16 %v358, %v354
    %v451 = vpack.c.b16 %v363, %v359
    %v452 = vpack.c.b16 %v364, %v360
    %v453 = vpack.c.b16 %v365, %v361
    %v454 = vpack.c.b16 %v366, %v362
    %v455 = vpack.c.b16 %v371, %v367
    %v456 = vpack.c.b16 %v372, %v368
    %v457 = vpack.c.b16 %v373, %v369
    %v458 = vpack.c.b16 %v374, %v370
    %v459 = vpack.c.b16 %v379, %v375
    %v460 = vpack.c.b16 %v380, %v376
    %v461 = vpack.c.b16 %v381, %v377
    %v462 = vpack.c.b16 %v382, %v378
    %v463 = vpack.c.b16 %v387, %v383
    %v464 = vpack.c.b16 %v388, %v384
    %v465 = vpack.c.b16 %v389, %v385
    %v466 = vpack.c.b16 %v390, %v386
    %v467 = vpack.c.b16 %v395, %v391
    %v468 = vpack.c.b16 %v396, %v392
    %v469 = vpack.c.b16 %v397, %v393
    %v470 = vpack.c.b16 %v398, %v394
    %v471 = vpack.c.b16 %v403, %v399
    %v472 = vpack.c.b16 %v404, %v400
    %v473 = vpack.c.b16 %v405, %v401
    %v474 = vpack.c.b16 %v406, %v402
    %v475 = vpack.c.b16 %v411, %v407
    %v476 = vpack.c.b16 %v412, %v408
    %v477 = vpack.c.b16 %v413, %v409
    %v478 = vpack.c.b16 %v414, %v410
    %543 = vmatprep.subr.bf16.mxu0 %v444
    %544 = vmatpush1.bf16.msra.mxu0 %v443
    %545 = vmatprep.subr.bf16.mxu0 %v440
    %546 = vmatpush1.bf16.msra.mxu0 %v439
    %547 = vmatprep.subr.bf16.mxu0 %v436
    %548 = vmatpush1.bf16.msra.mxu0 %v435
    %549 = vmatprep.subr.bf16.mxu0 %v432
    %550 = vmatpush1.bf16.msra.mxu0 %v431
    %551 = vmatprep.subr.bf16.mxu0 %v428
    %552 = vmatpush1.bf16.msra.mxu0 %v427
    %553 = vmatprep.subr.bf16.mxu0 %v424
    %554 = vmatpush1.bf16.msra.mxu0 %v423
    %555 = vmatprep.subr.bf16.mxu0 %v420
    %556 = vmatpush1.bf16.msra.mxu0 %v419
    %557 = vmatprep.subr.bf16.mxu0 %v416
    %558 = vmatpush1.bf16.msra.mxu0 %v415
    %559 = vmatprep.subr.bf16.mxu0 %v476
    %560 = vmatpush2.bf16.msra.mxu0 %v475
    %561 = vmatprep.subr.bf16.mxu0 %v472
    %562 = vmatpush2.bf16.msra.mxu0 %v471
    %563 = vmatprep.subr.bf16.mxu0 %v468
    %564 = vmatpush2.bf16.msra.mxu0 %v467
    %565 = vmatprep.subr.bf16.mxu0 %v464
    %566 = vmatpush2.bf16.msra.mxu0 %v463
    %567 = vmatprep.subr.bf16.mxu0 %v460
    %568 = vmatpush2.bf16.msra.mxu0 %v459
    %569 = vmatprep.subr.bf16.mxu0 %v456
    %570 = vmatpush2.bf16.msra.mxu0 %v455
    %571 = vmatprep.subr.bf16.mxu0 %v452
    %572 = vmatpush2.bf16.msra.mxu0 %v451
    %573 = vmatprep.subr.bf16.mxu0 %v448
    %574 = vmatpush2.bf16.msra.mxu0 %v447
    %575 = vmatprep.mubr.bf16.mxu0 %v157
    %576 = vmatmul.mubr.bf16.gmra.mxu0 %v156
    %v577 = vpop.f32.mrf.mxu0
    %v578 = vadd.f32 0.0, %v577
    %v579 = vpop.f32.mrf.mxu0
    %v580 = vadd.f32 0.0, %v579
    %v581 = vpop.f32.mrf.mxu0
    %v582 = vpop.f32.mrf.mxu0
    %583 = vdwg.mxu0
    %584 = vmatprep.subr.bf16.mxu0 %v446
    %585 = vmatpush1.bf16.msra.mxu0 %v445
    %586 = vmatprep.subr.bf16.mxu0 %v442
    %587 = vmatpush1.bf16.msra.mxu0 %v441
    %588 = vmatprep.subr.bf16.mxu0 %v438
    %589 = vmatpush1.bf16.msra.mxu0 %v437
    %590 = vmatprep.subr.bf16.mxu0 %v434
    %591 = vmatpush1.bf16.msra.mxu0 %v433
    %592 = vmatprep.subr.bf16.mxu0 %v430
    %593 = vmatpush1.bf16.msra.mxu0 %v429
    %594 = vmatprep.subr.bf16.mxu0 %v426
    %595 = vmatpush1.bf16.msra.mxu0 %v425
    %596 = vmatprep.subr.bf16.mxu0 %v422
    %597 = vmatpush1.bf16.msra.mxu0 %v421
    %598 = vmatprep.subr.bf16.mxu0 %v418
    %599 = vmatpush1.bf16.msra.mxu0 %v417
    %600 = vmatprep.subr.bf16.mxu0 %v478
    %601 = vmatpush2.bf16.msra.mxu0 %v477
    %602 = vmatprep.subr.bf16.mxu0 %v474
    %603 = vmatpush2.bf16.msra.mxu0 %v473
    %604 = vmatprep.subr.bf16.mxu0 %v470
    %605 = vmatpush2.bf16.msra.mxu0 %v469
    %606 = vmatprep.subr.bf16.mxu0 %v466
    %607 = vmatpush2.bf16.msra.mxu0 %v465
    %608 = vmatprep.subr.bf16.mxu0 %v462
    %609 = vmatpush2.bf16.msra.mxu0 %v461
    %610 = vmatprep.subr.bf16.mxu0 %v458
    %611 = vmatpush2.bf16.msra.mxu0 %v457
    %612 = vmatprep.subr.bf16.mxu0 %v454
    %613 = vmatpush2.bf16.msra.mxu0 %v453
    %614 = vmatprep.subr.bf16.mxu0 %v450
    %615 = vmatpush2.bf16.msra.mxu0 %v449
    %616 = vmatprep.mubr.bf16.mxu0 %v157
    %617 = vmatmul.mubr.bf16.gmra.mxu0 %v156
    %v618 = vpop.f32.mrf.mxu0
    %v619 = vadd.f32 0.0, %v618
    %v620 = vpop.f32.mrf.mxu0
    %v621 = vadd.f32 0.0, %v620
    %v622 = vpop.f32.mrf.mxu0
    %v623 = vpop.f32.mrf.mxu0
    %624 = vdwg.mxu0
    %v689 = vunpack.c.l.b16 %v68
    %v690 = vunpack.c.h.b16 %v68
    %v691 = vunpack.c.l.b16 %v69
    %v692 = vunpack.c.h.b16 %v69
    %v693 = vunpack.c.l.b16 %v70
    %v694 = vunpack.c.h.b16 %v70
    %v695 = vunpack.c.l.b16 %v71
    %v696 = vunpack.c.h.b16 %v71
    %v697 = vunpack.c.l.b16 %v72
    %v698 = vunpack.c.h.b16 %v72
    %v699 = vunpack.c.l.b16 %v73
    %v700 = vunpack.c.h.b16 %v73
    %v701 = vunpack.c.l.b16 %v74
    %v702 = vunpack.c.h.b16 %v74
    %v703 = vunpack.c.l.b16 %v75
    %v704 = vunpack.c.h.b16 %v75
    %v705 = vunpack.c.l.b16 %v76
    %v706 = vunpack.c.h.b16 %v76
    %v707 = vunpack.c.l.b16 %v77
    %v708 = vunpack.c.h.b16 %v77
    %v709 = vunpack.c.l.b16 %v78
    %v710 = vunpack.c.h.b16 %v78
    %v711 = vunpack.c.l.b16 %v79
    %v712 = vunpack.c.h.b16 %v79
    %v713 = vunpack.c.l.b16 %v80
    %v714 = vunpack.c.h.b16 %v80
    %v715 = vunpack.c.l.b16 %v81
    %v716 = vunpack.c.h.b16 %v81
    %v717 = vunpack.c.l.b16 %v82
    %v718 = vunpack.c.h.b16 %v82
    %v719 = vunpack.c.l.b16 %v83
    %v720 = vunpack.c.h.b16 %v83
    %v721 = vunpack.c.l.b16 %v84
    %v722 = vunpack.c.h.b16 %v84
    %v723 = vunpack.c.l.b16 %v85
    %v724 = vunpack.c.h.b16 %v85
    %v725 = vunpack.c.l.b16 %v86
    %v726 = vunpack.c.h.b16 %v86
    %v727 = vunpack.c.l.b16 %v87
    %v728 = vunpack.c.h.b16 %v87
    %v729 = vunpack.c.l.b16 %v88
    %v730 = vunpack.c.h.b16 %v88
    %v731 = vunpack.c.l.b16 %v89
    %v732 = vunpack.c.h.b16 %v89
    %v733 = vunpack.c.l.b16 %v90
    %v734 = vunpack.c.h.b16 %v90
    %v735 = vunpack.c.l.b16 %v91
    %v736 = vunpack.c.h.b16 %v91
    %v737 = vunpack.c.l.b16 %v92
    %v738 = vunpack.c.h.b16 %v92
    %v739 = vunpack.c.l.b16 %v93
    %v740 = vunpack.c.h.b16 %v93
    %v741 = vunpack.c.l.b16 %v94
    %v742 = vunpack.c.h.b16 %v94
    %v743 = vunpack.c.l.b16 %v95
    %v744 = vunpack.c.h.b16 %v95
    %v745 = vunpack.c.l.b16 %v96
    %v746 = vunpack.c.h.b16 %v96
    %v747 = vunpack.c.l.b16 %v97
    %v748 = vunpack.c.h.b16 %v97
    %v749 = vunpack.c.l.b16 %v98
    %v750 = vunpack.c.h.b16 %v98
    %v751 = vunpack.c.l.b16 %v99
    %v752 = vunpack.c.h.b16 %v99
    %v753 = vunpack.c.l.b16 %v100
    %v754 = vunpack.c.h.b16 %v100
    %v755 = vunpack.c.l.b16 %v101
    %v756 = vunpack.c.h.b16 %v101
    %v757 = vunpack.c.l.b16 %v102
    %v758 = vunpack.c.h.b16 %v102
    %v759 = vunpack.c.l.b16 %v103
    %v760 = vunpack.c.h.b16 %v103
    %v761 = vunpack.c.l.b16 %v104
    %v762 = vunpack.c.h.b16 %v104
    %v763 = vunpack.c.l.b16 %v105
    %v764 = vunpack.c.h.b16 %v105
    %v765 = vunpack.c.l.b16 %v106
    %v766 = vunpack.c.h.b16 %v106
    %v767 = vunpack.c.l.b16 %v107
    %v768 = vunpack.c.h.b16 %v107
    %v769 = vunpack.c.l.b16 %v108
    %v770 = vunpack.c.h.b16 %v108
    %v771 = vunpack.c.l.b16 %v109
    %v772 = vunpack.c.h.b16 %v109
    %v773 = vunpack.c.l.b16 %v110
    %v774 = vunpack.c.h.b16 %v110
    %v775 = vunpack.c.l.b16 %v111
    %v776 = vunpack.c.h.b16 %v111
    %v777 = vunpack.c.l.b16 %v112
    %v778 = vunpack.c.h.b16 %v112
    %v779 = vunpack.c.l.b16 %v113
    %v780 = vunpack.c.h.b16 %v113
    %v781 = vunpack.c.l.b16 %v114
    %v782 = vunpack.c.h.b16 %v114
    %v783 = vunpack.c.l.b16 %v115
    %v784 = vunpack.c.h.b16 %v115
    %v785 = vunpack.c.l.b16 %v116
    %v786 = vunpack.c.h.b16 %v116
    %v787 = vunpack.c.l.b16 %v117
    %v788 = vunpack.c.h.b16 %v117
    %v789 = vunpack.c.l.b16 %v118
    %v790 = vunpack.c.h.b16 %v118
    %v791 = vunpack.c.l.b16 %v119
    %v792 = vunpack.c.h.b16 %v119
    %v793 = vunpack.c.l.b16 %v120
    %v794 = vunpack.c.h.b16 %v120
    %v795 = vunpack.c.l.b16 %v121
    %v796 = vunpack.c.h.b16 %v121
    %v797 = vunpack.c.l.b16 %v122
    %v798 = vunpack.c.h.b16 %v122
    %v799 = vunpack.c.l.b16 %v123
    %v800 = vunpack.c.h.b16 %v123
    %v801 = vunpack.c.l.b16 %v124
    %v802 = vunpack.c.h.b16 %v124
    %v803 = vunpack.c.l.b16 %v125
    %v804 = vunpack.c.h.b16 %v125
    %v805 = vunpack.c.l.b16 %v126
    %v806 = vunpack.c.h.b16 %v126
    %v807 = vunpack.c.l.b16 %v127
    %v808 = vunpack.c.h.b16 %v127
    %v809 = vunpack.c.l.b16 %v128
    %v810 = vunpack.c.h.b16 %v128
    %v811 = vunpack.c.l.b16 %v129
    %v812 = vunpack.c.h.b16 %v129
    %v813 = vunpack.c.l.b16 %v130
    %v814 = vunpack.c.h.b16 %v130
    %v815 = vunpack.c.l.b16 %v131
    %v816 = vunpack.c.h.b16 %v131
    %v817 = vpack.c.b16 %v693, %v689
    %v818 = vpack.c.b16 %v694, %v690
    %v819 = vpack.c.b16 %v695, %v691
    %v820 = vpack.c.b16 %v696, %v692
    %v821 = vpack.c.b16 %v701, %v697
    %v822 = vpack.c.b16 %v702, %v698
    %v823 = vpack.c.b16 %v703, %v699
    %v824 = vpack.c.b16 %v704, %v700
    %v825 = vpack.c.b16 %v709, %v705
    %v826 = vpack.c.b16 %v710, %v706
    %v827 = vpack.c.b16 %v711, %v707
    %v828 = vpack.c.b16 %v712, %v708
    %v829 = vpack.c.b16 %v717, %v713
    %v830 = vpack.c.b16 %v718, %v714
    %v831 = vpack.c.b16 %v719, %v715
    %v832 = vpack.c.b16 %v720, %v716
    %v833 = vpack.c.b16 %v725, %v721
    %v834 = vpack.c.b16 %v726, %v722
    %v835 = vpack.c.b16 %v727, %v723
    %v836 = vpack.c.b16 %v728, %v724
    %v837 = vpack.c.b16 %v733, %v729
    %v838 = vpack.c.b16 %v734, %v730
    %v839 = vpack.c.b16 %v735, %v731
    %v840 = vpack.c.b16 %v736, %v732
    %v841 = vpack.c.b16 %v741, %v737
    %v842 = vpack.c.b16 %v742, %v738
    %v843 = vpack.c.b16 %v743, %v739
    %v844 = vpack.c.b16 %v744, %v740
    %v845 = vpack.c.b16 %v749, %v745
    %v846 = vpack.c.b16 %v750, %v746
    %v847 = vpack.c.b16 %v751, %v747
    %v848 = vpack.c.b16 %v752, %v748
    %v849 = vpack.c.b16 %v757, %v753
    %v850 = vpack.c.b16 %v758, %v754
    %v851 = vpack.c.b16 %v759, %v755
    %v852 = vpack.c.b16 %v760, %v756
    %v853 = vpack.c.b16 %v765, %v761
    %v854 = vpack.c.b16 %v766, %v762
    %v855 = vpack.c.b16 %v767, %v763
    %v856 = vpack.c.b16 %v768, %v764
    %v857 = vpack.c.b16 %v773, %v769
    %v858 = vpack.c.b16 %v774, %v770
    %v859 = vpack.c.b16 %v775, %v771
    %v860 = vpack.c.b16 %v776, %v772
    %v861 = vpack.c.b16 %v781, %v777
    %v862 = vpack.c.b16 %v782, %v778
    %v863 = vpack.c.b16 %v783, %v779
    %v864 = vpack.c.b16 %v784, %v780
    %v865 = vpack.c.b16 %v789, %v785
    %v866 = vpack.c.b16 %v790, %v786
    %v867 = vpack.c.b16 %v791, %v787
    %v868 = vpack.c.b16 %v792, %v788
    %v869 = vpack.c.b16 %v797, %v793
    %v870 = vpack.c.b16 %v798, %v794
    %v871 = vpack.c.b16 %v799, %v795
    %v872 = vpack.c.b16 %v800, %v796
    %v873 = vpack.c.b16 %v805, %v801
    %v874 = vpack.c.b16 %v806, %v802
    %v875 = vpack.c.b16 %v807, %v803
    %v876 = vpack.c.b16 %v808, %v804
    %v877 = vpack.c.b16 %v813, %v809
    %v878 = vpack.c.b16 %v814, %v810
    %v879 = vpack.c.b16 %v815, %v811
    %v880 = vpack.c.b16 %v816, %v812
    %945 = vmatprep.subr.bf16.mxu0 %v846
    %946 = vmatpush1.bf16.msra.mxu0 %v845
    %947 = vmatprep.subr.bf16.mxu0 %v842
    %948 = vmatpush1.bf16.msra.mxu0 %v841
    %949 = vmatprep.subr.bf16.mxu0 %v838
    %950 = vmatpush1.bf16.msra.mxu0 %v837
    %951 = vmatprep.subr.bf16.mxu0 %v834
    %952 = vmatpush1.bf16.msra.mxu0 %v833
    %953 = vmatprep.subr.bf16.mxu0 %v830
    %954 = vmatpush1.bf16.msra.mxu0 %v829
    %955 = vmatprep.subr.bf16.mxu0 %v826
    %956 = vmatpush1.bf16.msra.mxu0 %v825
    %957 = vmatprep.subr.bf16.mxu0 %v822
    %958 = vmatpush1.bf16.msra.mxu0 %v821
    %959 = vmatprep.subr.bf16.mxu0 %v818
    %960 = vmatpush1.bf16.msra.mxu0 %v817
    %961 = vmatprep.subr.bf16.mxu0 %v878
    %962 = vmatpush2.bf16.msra.mxu0 %v877
    %963 = vmatprep.subr.bf16.mxu0 %v874
    %964 = vmatpush2.bf16.msra.mxu0 %v873
    %965 = vmatprep.subr.bf16.mxu0 %v870
    %966 = vmatpush2.bf16.msra.mxu0 %v869
    %967 = vmatprep.subr.bf16.mxu0 %v866
    %968 = vmatpush2.bf16.msra.mxu0 %v865
    %969 = vmatprep.subr.bf16.mxu0 %v862
    %970 = vmatpush2.bf16.msra.mxu0 %v861
    %971 = vmatprep.subr.bf16.mxu0 %v858
    %972 = vmatpush2.bf16.msra.mxu0 %v857
    %973 = vmatprep.subr.bf16.mxu0 %v854
    %974 = vmatpush2.bf16.msra.mxu0 %v853
    %975 = vmatprep.subr.bf16.mxu0 %v850
    %976 = vmatpush2.bf16.msra.mxu0 %v849
    %977 = vmatprep.mubr.bf16.mxu0 %v67
    %978 = vmatmul.mubr.bf16.gmra.mxu0 %v66
    %v979 = vpop.f32.mrf.mxu0
    %v980 = vadd.f32 %v578, %v979
    %v981 = vpop.f32.mrf.mxu0
    %v982 = vadd.f32 %v580, %v981
    %v983 = vpop.f32.mrf.mxu0
    %v984 = vpop.f32.mrf.mxu0
    %985 = vdwg.mxu0
    %986 = vmatprep.subr.bf16.mxu0 %v848
    %987 = vmatpush1.bf16.msra.mxu0 %v847
    %988 = vmatprep.subr.bf16.mxu0 %v844
    %989 = vmatpush1.bf16.msra.mxu0 %v843
    %990 = vmatprep.subr.bf16.mxu0 %v840
    %991 = vmatpush1.bf16.msra.mxu0 %v839
    %992 = vmatprep.subr.bf16.mxu0 %v836
    %993 = vmatpush1.bf16.msra.mxu0 %v835
    %994 = vmatprep.subr.bf16.mxu0 %v832
    %995 = vmatpush1.bf16.msra.mxu0 %v831
    %996 = vmatprep.subr.bf16.mxu0 %v828
    %997 = vmatpush1.bf16.msra.mxu0 %v827
    %998 = vmatprep.subr.bf16.mxu0 %v824
    %999 = vmatpush1.bf16.msra.mxu0 %v823
    %1000 = vmatprep.subr.bf16.mxu0 %v820
    %1001 = vmatpush1.bf16.msra.mxu0 %v819
    %1002 = vmatprep.subr.bf16.mxu0 %v880
    %1003 = vmatpush2.bf16.msra.mxu0 %v879
    %1004 = vmatprep.subr.bf16.mxu0 %v876
    %1005 = vmatpush2.bf16.msra.mxu0 %v875
    %1006 = vmatprep.subr.bf16.mxu0 %v872
    %1007 = vmatpush2.bf16.msra.mxu0 %v871
    %1008 = vmatprep.subr.bf16.mxu0 %v868
    %1009 = vmatpush2.bf16.msra.mxu0 %v867
    %1010 = vmatprep.subr.bf16.mxu0 %v864
    %1011 = vmatpush2.bf16.msra.mxu0 %v863
    %1012 = vmatprep.subr.bf16.mxu0 %v860
    %1013 = vmatpush2.bf16.msra.mxu0 %v859
    %1014 = vmatprep.subr.bf16.mxu0 %v856
    %1015 = vmatpush2.bf16.msra.mxu0 %v855
    %1016 = vmatprep.subr.bf16.mxu0 %v852
    %1017 = vmatpush2.bf16.msra.mxu0 %v851
    %1018 = vmatprep.mubr.bf16.mxu0 %v67
    %1019 = vmatmul.mubr.bf16.gmra.mxu0 %v66
    %v1020 = vpop.f32.mrf.mxu0
    %v1021 = vadd.f32 %v619, %v1020
    %v1022 = vpop.f32.mrf.mxu0
    %v1023 = vadd.f32 %v621, %v1022
    %v1024 = vpop.f32.mrf.mxu0
    %v1025 = vpop.f32.mrf.mxu0
    %1026 = vdwg.mxu0
    %s1027 = sld [smem:[#allocation2 + $0x100]]
    %v1028 = vstv %s1027
    %v1029 = vmul.f32 %v1028, %v31
    %v1030 = vmul.f32 %v1028, %v32
    %v1031 = vadd.f32 %v1029, 0.0
    %v1032 = vadd.f32 %v1030, 0.0
    %s1033 = sld [smem:[#allocation2 + $0x101]]
    %v1034 = vstv %s1033
    %v1035 = vmul.f32 %v1034, %v40
    %v1036 = vmul.f32 %v1034, %v41
    %v1037 = vadd.f32 %v1031, %v1035
    %v1038 = vadd.f32 %v1032, %v1036
    %s1039 = sld [smem:[#allocation2 + $0x102]]
    %v1040 = vstv %s1039
    %v1041 = vmul.f32 %v1040, %v49
    %v1042 = vmul.f32 %v1040, %v50
    %v1043 = vadd.f32 %v1037, %v1041
    %v1044 = vadd.f32 %v1038, %v1042
    %s1045 = sld [smem:[#allocation2 + $0x103]]
    %v1046 = vstv %s1045
    %v1047 = vmul.f32 %v1046, %v58
    %v1048 = vmul.f32 %v1046, %v59
    %v1049 = vadd.f32 %v1043, %v1047
    %v1050 = vadd.f32 %v1044, %v1048
    %v1051 = vpack.c.bf16 %v1049, %v1049
    %v1052 = vpack.c.bf16 %v1050, %v1050
    %s1053 = scalar_lea.vmem %s2, 1024
    %v1054 = vld [vmem:[%s1053] sm:$0xff]
    %v1055 = vld [vmem:[%s1053 + $0x8] sm:$0xff]
    %v1056 = vld [vmem:[%s1053 + $0x10] sm:$0xff]
    %v1057 = vld [vmem:[%s1053 + $0x18] sm:$0xff]
    %v1058 = vld [vmem:[%s1053 + $0x20] sm:$0xff]
    %v1059 = vld [vmem:[%s1053 + $0x28] sm:$0xff]
    %v1060 = vld [vmem:[%s1053 + $0x30] sm:$0xff]
    %v1061 = vld [vmem:[%s1053 + $0x38] sm:$0xff]
    %v1062 = vld [vmem:[%s1053 + $0x40] sm:$0xff]
    %v1063 = vld [vmem:[%s1053 + $0x48] sm:$0xff]
    %v1064 = vld [vmem:[%s1053 + $0x50] sm:$0xff]
    %v1065 = vld [vmem:[%s1053 + $0x58] sm:$0xff]
    %v1066 = vld [vmem:[%s1053 + $0x60] sm:$0xff]
    %v1067 = vld [vmem:[%s1053 + $0x68] sm:$0xff]
    %v1068 = vld [vmem:[%s1053 + $0x70] sm:$0xff]
    %v1069 = vld [vmem:[%s1053 + $0x78] sm:$0xff]
    %v1070 = vld [vmem:[%s1053 + $0x80] sm:$0xff]
    %v1071 = vld [vmem:[%s1053 + $0x88] sm:$0xff]
    %v1072 = vld [vmem:[%s1053 + $0x90] sm:$0xff]
    %v1073 = vld [vmem:[%s1053 + $0x98] sm:$0xff]
    %v1074 = vld [vmem:[%s1053 + $0xa0] sm:$0xff]
    %v1075 = vld [vmem:[%s1053 + $0xa8] sm:$0xff]
    %v1076 = vld [vmem:[%s1053 + $0xb0] sm:$0xff]
    %v1077 = vld [vmem:[%s1053 + $0xb8] sm:$0xff]
    %v1078 = vld [vmem:[%s1053 + $0xc0] sm:$0xff]
    %v1079 = vld [vmem:[%s1053 + $0xc8] sm:$0xff]
    %v1080 = vld [vmem:[%s1053 + $0xd0] sm:$0xff]
    %v1081 = vld [vmem:[%s1053 + $0xd8] sm:$0xff]
    %v1082 = vld [vmem:[%s1053 + $0xe0] sm:$0xff]
    %v1083 = vld [vmem:[%s1053 + $0xe8] sm:$0xff]
    %v1084 = vld [vmem:[%s1053 + $0xf0] sm:$0xff]
    %v1085 = vld [vmem:[%s1053 + $0xf8] sm:$0xff]
    %v1086 = vld [vmem:[%s1053 + $0x100] sm:$0xff]
    %v1087 = vld [vmem:[%s1053 + $0x108] sm:$0xff]
    %v1088 = vld [vmem:[%s1053 + $0x110] sm:$0xff]
    %v1089 = vld [vmem:[%s1053 + $0x118] sm:$0xff]
    %v1090 = vld [vmem:[%s1053 + $0x120] sm:$0xff]
    %v1091 = vld [vmem:[%s1053 + $0x128] sm:$0xff]
    %v1092 = vld [vmem:[%s1053 + $0x130] sm:$0xff]
    %v1093 = vld [vmem:[%s1053 + $0x138] sm:$0xff]
    %v1094 = vld [vmem:[%s1053 + $0x140] sm:$0xff]
    %v1095 = vld [vmem:[%s1053 + $0x148] sm:$0xff]
    %v1096 = vld [vmem:[%s1053 + $0x150] sm:$0xff]
    %v1097 = vld [vmem:[%s1053 + $0x158] sm:$0xff]
    %v1098 = vld [vmem:[%s1053 + $0x160] sm:$0xff]
    %v1099 = vld [vmem:[%s1053 + $0x168] sm:$0xff]
    %v1100 = vld [vmem:[%s1053 + $0x170] sm:$0xff]
    %v1101 = vld [vmem:[%s1053 + $0x178] sm:$0xff]
    %v1102 = vld [vmem:[%s1053 + $0x180] sm:$0xff]
    %v1103 = vld [vmem:[%s1053 + $0x188] sm:$0xff]
    %v1104 = vld [vmem:[%s1053 + $0x190] sm:$0xff]
    %v1105 = vld [vmem:[%s1053 + $0x198] sm:$0xff]
    %v1106 = vld [vmem:[%s1053 + $0x1a0] sm:$0xff]
    %v1107 = vld [vmem:[%s1053 + $0x1a8] sm:$0xff]
    %v1108 = vld [vmem:[%s1053 + $0x1b0] sm:$0xff]
    %v1109 = vld [vmem:[%s1053 + $0x1b8] sm:$0xff]
    %v1110 = vld [vmem:[%s1053 + $0x1c0] sm:$0xff]
    %v1111 = vld [vmem:[%s1053 + $0x1c8] sm:$0xff]
    %v1112 = vld [vmem:[%s1053 + $0x1d0] sm:$0xff]
    %v1113 = vld [vmem:[%s1053 + $0x1d8] sm:$0xff]
    %v1114 = vld [vmem:[%s1053 + $0x1e0] sm:$0xff]
    %v1115 = vld [vmem:[%s1053 + $0x1e8] sm:$0xff]
    %v1116 = vld [vmem:[%s1053 + $0x1f0] sm:$0xff]
    %v1117 = vld [vmem:[%s1053 + $0x1f8] sm:$0xff]
    %v1182 = vunpack.c.l.b16 %v1054
    %v1183 = vunpack.c.h.b16 %v1054
    %v1184 = vunpack.c.l.b16 %v1055
    %v1185 = vunpack.c.h.b16 %v1055
    %v1186 = vunpack.c.l.b16 %v1056
    %v1187 = vunpack.c.h.b16 %v1056
    %v1188 = vunpack.c.l.b16 %v1057
    %v1189 = vunpack.c.h.b16 %v1057
    %v1190 = vunpack.c.l.b16 %v1058
    %v1191 = vunpack.c.h.b16 %v1058
    %v1192 = vunpack.c.l.b16 %v1059
    %v1193 = vunpack.c.h.b16 %v1059
    %v1194 = vunpack.c.l.b16 %v1060
    %v1195 = vunpack.c.h.b16 %v1060
    %v1196 = vunpack.c.l.b16 %v1061
    %v1197 = vunpack.c.h.b16 %v1061
    %v1198 = vunpack.c.l.b16 %v1062
    %v1199 = vunpack.c.h.b16 %v1062
    %v1200 = vunpack.c.l.b16 %v1063
    %v1201 = vunpack.c.h.b16 %v1063
    %v1202 = vunpack.c.l.b16 %v1064
    %v1203 = vunpack.c.h.b16 %v1064
    %v1204 = vunpack.c.l.b16 %v1065
    %v1205 = vunpack.c.h.b16 %v1065
    %v1206 = vunpack.c.l.b16 %v1066
    %v1207 = vunpack.c.h.b16 %v1066
    %v1208 = vunpack.c.l.b16 %v1067
    %v1209 = vunpack.c.h.b16 %v1067
    %v1210 = vunpack.c.l.b16 %v1068
    %v1211 = vunpack.c.h.b16 %v1068
    %v1212 = vunpack.c.l.b16 %v1069
    %v1213 = vunpack.c.h.b16 %v1069
    %v1214 = vunpack.c.l.b16 %v1070
    %v1215 = vunpack.c.h.b16 %v1070
    %v1216 = vunpack.c.l.b16 %v1071
    %v1217 = vunpack.c.h.b16 %v1071
    %v1218 = vunpack.c.l.b16 %v1072
    %v1219 = vunpack.c.h.b16 %v1072
    %v1220 = vunpack.c.l.b16 %v1073
    %v1221 = vunpack.c.h.b16 %v1073
    %v1222 = vunpack.c.l.b16 %v1074
    %v1223 = vunpack.c.h.b16 %v1074
    %v1224 = vunpack.c.l.b16 %v1075
    %v1225 = vunpack.c.h.b16 %v1075
    %v1226 = vunpack.c.l.b16 %v1076
    %v1227 = vunpack.c.h.b16 %v1076
    %v1228 = vunpack.c.l.b16 %v1077
    %v1229 = vunpack.c.h.b16 %v1077
    %v1230 = vunpack.c.l.b16 %v1078
    %v1231 = vunpack.c.h.b16 %v1078
    %v1232 = vunpack.c.l.b16 %v1079
    %v1233 = vunpack.c.h.b16 %v1079
    %v1234 = vunpack.c.l.b16 %v1080
    %v1235 = vunpack.c.h.b16 %v1080
    %v1236 = vunpack.c.l.b16 %v1081
    %v1237 = vunpack.c.h.b16 %v1081
    %v1238 = vunpack.c.l.b16 %v1082
    %v1239 = vunpack.c.h.b16 %v1082
    %v1240 = vunpack.c.l.b16 %v1083
    %v1241 = vunpack.c.h.b16 %v1083
    %v1242 = vunpack.c.l.b16 %v1084
    %v1243 = vunpack.c.h.b16 %v1084
    %v1244 = vunpack.c.l.b16 %v1085
    %v1245 = vunpack.c.h.b16 %v1085
    %v1246 = vunpack.c.l.b16 %v1086
    %v1247 = vunpack.c.h.b16 %v1086
    %v1248 = vunpack.c.l.b16 %v1087
    %v1249 = vunpack.c.h.b16 %v1087
    %v1250 = vunpack.c.l.b16 %v1088
    %v1251 = vunpack.c.h.b16 %v1088
    %v1252 = vunpack.c.l.b16 %v1089
    %v1253 = vunpack.c.h.b16 %v1089
    %v1254 = vunpack.c.l.b16 %v1090
    %v1255 = vunpack.c.h.b16 %v1090
    %v1256 = vunpack.c.l.b16 %v1091
    %v1257 = vunpack.c.h.b16 %v1091
    %v1258 = vunpack.c.l.b16 %v1092
    %v1259 = vunpack.c.h.b16 %v1092
    %v1260 = vunpack.c.l.b16 %v1093
    %v1261 = vunpack.c.h.b16 %v1093
    %v1262 = vunpack.c.l.b16 %v1094
    %v1263 = vunpack.c.h.b16 %v1094
    %v1264 = vunpack.c.l.b16 %v1095
    %v1265 = vunpack.c.h.b16 %v1095
    %v1266 = vunpack.c.l.b16 %v1096
    %v1267 = vunpack.c.h.b16 %v1096
    %v1268 = vunpack.c.l.b16 %v1097
    %v1269 = vunpack.c.h.b16 %v1097
    %v1270 = vunpack.c.l.b16 %v1098
    %v1271 = vunpack.c.h.b16 %v1098
    %v1272 = vunpack.c.l.b16 %v1099
    %v1273 = vunpack.c.h.b16 %v1099
    %v1274 = vunpack.c.l.b16 %v1100
    %v1275 = vunpack.c.h.b16 %v1100
    %v1276 = vunpack.c.l.b16 %v1101
    %v1277 = vunpack.c.h.b16 %v1101
    %v1278 = vunpack.c.l.b16 %v1102
    %v1279 = vunpack.c.h.b16 %v1102
    %v1280 = vunpack.c.l.b16 %v1103
    %v1281 = vunpack.c.h.b16 %v1103
    %v1282 = vunpack.c.l.b16 %v1104
    %v1283 = vunpack.c.h.b16 %v1104
    %v1284 = vunpack.c.l.b16 %v1105
    %v1285 = vunpack.c.h.b16 %v1105
    %v1286 = vunpack.c.l.b16 %v1106
    %v1287 = vunpack.c.h.b16 %v1106
    %v1288 = vunpack.c.l.b16 %v1107
    %v1289 = vunpack.c.h.b16 %v1107
    %v1290 = vunpack.c.l.b16 %v1108
    %v1291 = vunpack.c.h.b16 %v1108
    %v1292 = vunpack.c.l.b16 %v1109
    %v1293 = vunpack.c.h.b16 %v1109
    %v1294 = vunpack.c.l.b16 %v1110
    %v1295 = vunpack.c.h.b16 %v1110
    %v1296 = vunpack.c.l.b16 %v1111
    %v1297 = vunpack.c.h.b16 %v1111
    %v1298 = vunpack.c.l.b16 %v1112
    %v1299 = vunpack.c.h.b16 %v1112
    %v1300 = vunpack.c.l.b16 %v1113
    %v1301 = vunpack.c.h.b16 %v1113
    %v1302 = vunpack.c.l.b16 %v1114
    %v1303 = vunpack.c.h.b16 %v1114
    %v1304 = vunpack.c.l.b16 %v1115
    %v1305 = vunpack.c.h.b16 %v1115
    %v1306 = vunpack.c.l.b16 %v1116
    %v1307 = vunpack.c.h.b16 %v1116
    %v1308 = vunpack.c.l.b16 %v1117
    %v1309 = vunpack.c.h.b16 %v1117
    %v1310 = vpack.c.b16 %v1186, %v1182
    %v1311 = vpack.c.b16 %v1187, %v1183
    %v1312 = vpack.c.b16 %v1188, %v1184
    %v1313 = vpack.c.b16 %v1189, %v1185
    %v1314 = vpack.c.b16 %v1194, %v1190
    %v1315 = vpack.c.b16 %v1195, %v1191
    %v1316 = vpack.c.b16 %v1196, %v1192
    %v1317 = vpack.c.b16 %v1197, %v1193
    %v1318 = vpack.c.b16 %v1202, %v1198
    %v1319 = vpack.c.b16 %v1203, %v1199
    %v1320 = vpack.c.b16 %v1204, %v1200
    %v1321 = vpack.c.b16 %v1205, %v1201
    %v1322 = vpack.c.b16 %v1210, %v1206
    %v1323 = vpack.c.b16 %v1211, %v1207
    %v1324 = vpack.c.b16 %v1212, %v1208
    %v1325 = vpack.c.b16 %v1213, %v1209
    %v1326 = vpack.c.b16 %v1218, %v1214
    %v1327 = vpack.c.b16 %v1219, %v1215
    %v1328 = vpack.c.b16 %v1220, %v1216
    %v1329 = vpack.c.b16 %v1221, %v1217
    %v1330 = vpack.c.b16 %v1226, %v1222
    %v1331 = vpack.c.b16 %v1227, %v1223
    %v1332 = vpack.c.b16 %v1228, %v1224
    %v1333 = vpack.c.b16 %v1229, %v1225
    %v1334 = vpack.c.b16 %v1234, %v1230
    %v1335 = vpack.c.b16 %v1235, %v1231
    %v1336 = vpack.c.b16 %v1236, %v1232
    %v1337 = vpack.c.b16 %v1237, %v1233
    %v1338 = vpack.c.b16 %v1242, %v1238
    %v1339 = vpack.c.b16 %v1243, %v1239
    %v1340 = vpack.c.b16 %v1244, %v1240
    %v1341 = vpack.c.b16 %v1245, %v1241
    %v1342 = vpack.c.b16 %v1250, %v1246
    %v1343 = vpack.c.b16 %v1251, %v1247
    %v1344 = vpack.c.b16 %v1252, %v1248
    %v1345 = vpack.c.b16 %v1253, %v1249
    %v1346 = vpack.c.b16 %v1258, %v1254
    %v1347 = vpack.c.b16 %v1259, %v1255
    %v1348 = vpack.c.b16 %v1260, %v1256
    %v1349 = vpack.c.b16 %v1261, %v1257
    %v1350 = vpack.c.b16 %v1266, %v1262
    %v1351 = vpack.c.b16 %v1267, %v1263
    %v1352 = vpack.c.b16 %v1268, %v1264
    %v1353 = vpack.c.b16 %v1269, %v1265
    %v1354 = vpack.c.b16 %v1274, %v1270
    %v1355 = vpack.c.b16 %v1275, %v1271
    %v1356 = vpack.c.b16 %v1276, %v1272
    %v1357 = vpack.c.b16 %v1277, %v1273
    %v1358 = vpack.c.b16 %v1282, %v1278
    %v1359 = vpack.c.b16 %v1283, %v1279
    %v1360 = vpack.c.b16 %v1284, %v1280
    %v1361 = vpack.c.b16 %v1285, %v1281
    %v1362 = vpack.c.b16 %v1290, %v1286
    %v1363 = vpack.c.b16 %v1291, %v1287
    %v1364 = vpack.c.b16 %v1292, %v1288
    %v1365 = vpack.c.b16 %v1293, %v1289
    %v1366 = vpack.c.b16 %v1298, %v1294
    %v1367 = vpack.c.b16 %v1299, %v1295
    %v1368 = vpack.c.b16 %v1300, %v1296
    %v1369 = vpack.c.b16 %v1301, %v1297
    %v1370 = vpack.c.b16 %v1306, %v1302
    %v1371 = vpack.c.b16 %v1307, %v1303
    %v1372 = vpack.c.b16 %v1308, %v1304
    %v1373 = vpack.c.b16 %v1309, %v1305
    %1438 = vmatprep.subr.bf16.mxu0 %v1339
    %1439 = vmatpush1.bf16.msra.mxu0 %v1338
    %1440 = vmatprep.subr.bf16.mxu0 %v1335
    %1441 = vmatpush1.bf16.msra.mxu0 %v1334
    %1442 = vmatprep.subr.bf16.mxu0 %v1331
    %1443 = vmatpush1.bf16.msra.mxu0 %v1330
    %1444 = vmatprep.subr.bf16.mxu0 %v1327
    %1445 = vmatpush1.bf16.msra.mxu0 %v1326
    %1446 = vmatprep.subr.bf16.mxu0 %v1323
    %1447 = vmatpush1.bf16.msra.mxu0 %v1322
    %1448 = vmatprep.subr.bf16.mxu0 %v1319
    %1449 = vmatpush1.bf16.msra.mxu0 %v1318
    %1450 = vmatprep.subr.bf16.mxu0 %v1315
    %1451 = vmatpush1.bf16.msra.mxu0 %v1314
    %1452 = vmatprep.subr.bf16.mxu0 %v1311
    %1453 = vmatpush1.bf16.msra.mxu0 %v1310
    %1454 = vmatprep.subr.bf16.mxu0 %v1371
    %1455 = vmatpush2.bf16.msra.mxu0 %v1370
    %1456 = vmatprep.subr.bf16.mxu0 %v1367
    %1457 = vmatpush2.bf16.msra.mxu0 %v1366
    %1458 = vmatprep.subr.bf16.mxu0 %v1363
    %1459 = vmatpush2.bf16.msra.mxu0 %v1362
    %1460 = vmatprep.subr.bf16.mxu0 %v1359
    %1461 = vmatpush2.bf16.msra.mxu0 %v1358
    %1462 = vmatprep.subr.bf16.mxu0 %v1355
    %1463 = vmatpush2.bf16.msra.mxu0 %v1354
    %1464 = vmatprep.subr.bf16.mxu0 %v1351
    %1465 = vmatpush2.bf16.msra.mxu0 %v1350
    %1466 = vmatprep.subr.bf16.mxu0 %v1347
    %1467 = vmatpush2.bf16.msra.mxu0 %v1346
    %1468 = vmatprep.subr.bf16.mxu0 %v1343
    %1469 = vmatpush2.bf16.msra.mxu0 %v1342
    %1470 = vmatprep.mubr.bf16.mxu0 %v1052
    %1471 = vmatmul.mubr.bf16.gmra.mxu0 %v1051
    %v1472 = vpop.f32.mrf.mxu0
    %v1473 = vadd.f32 0.0, %v1472
    %v1474 = vpop.f32.mrf.mxu0
    %v1475 = vadd.f32 0.0, %v1474
    %v1476 = vpop.f32.mrf.mxu0
    %v1477 = vpop.f32.mrf.mxu0
    %1478 = vdwg.mxu0
    %1479 = vmatprep.subr.bf16.mxu0 %v1341
    %1480 = vmatpush1.bf16.msra.mxu0 %v1340
    %1481 = vmatprep.subr.bf16.mxu0 %v1337
    %1482 = vmatpush1.bf16.msra.mxu0 %v1336
    %1483 = vmatprep.subr.bf16.mxu0 %v1333
    %1484 = vmatpush1.bf16.msra.mxu0 %v1332
    %1485 = vmatprep.subr.bf16.mxu0 %v1329
    %1486 = vmatpush1.bf16.msra.mxu0 %v1328
    %1487 = vmatprep.subr.bf16.mxu0 %v1325
    %1488 = vmatpush1.bf16.msra.mxu0 %v1324
    %1489 = vmatprep.subr.bf16.mxu0 %v1321
    %1490 = vmatpush1.bf16.msra.mxu0 %v1320
    %1491 = vmatprep.subr.bf16.mxu0 %v1317
    %1492 = vmatpush1.bf16.msra.mxu0 %v1316
    %1493 = vmatprep.subr.bf16.mxu0 %v1313
    %1494 = vmatpush1.bf16.msra.mxu0 %v1312
    %1495 = vmatprep.subr.bf16.mxu0 %v1373
    %1496 = vmatpush2.bf16.msra.mxu0 %v1372
    %1497 = vmatprep.subr.bf16.mxu0 %v1369
    %1498 = vmatpush2.bf16.msra.mxu0 %v1368
    %1499 = vmatprep.subr.bf16.mxu0 %v1365
    %1500 = vmatpush2.bf16.msra.mxu0 %v1364
    %1501 = vmatprep.subr.bf16.mxu0 %v1361
    %1502 = vmatpush2.bf16.msra.mxu0 %v1360
    %1503 = vmatprep.subr.bf16.mxu0 %v1357
    %1504 = vmatpush2.bf16.msra.mxu0 %v1356
    %1505 = vmatprep.subr.bf16.mxu0 %v1353
    %1506 = vmatpush2.bf16.msra.mxu0 %v1352
    %1507 = vmatprep.subr.bf16.mxu0 %v1349
    %1508 = vmatpush2.bf16.msra.mxu0 %v1348
    %1509 = vmatprep.subr.bf16.mxu0 %v1345
    %1510 = vmatpush2.bf16.msra.mxu0 %v1344
    %1511 = vmatprep.mubr.bf16.mxu0 %v1052
    %1512 = vmatmul.mubr.bf16.gmra.mxu0 %v1051
    %v1513 = vpop.f32.mrf.mxu0
    %v1514 = vadd.f32 0.0, %v1513
    %v1515 = vpop.f32.mrf.mxu0
    %v1516 = vadd.f32 0.0, %v1515
    %v1517 = vpop.f32.mrf.mxu0
    %v1518 = vpop.f32.mrf.mxu0
    %1519 = vdwg.mxu0
    %v1520 = vadd.f32 %v980, %v1473
    %v1521 = vadd.f32 %v982, %v1475
    %v1522 = vadd.f32 %v1021, %v1514
    %v1523 = vadd.f32 %v1023, %v1516
    %s1524 = sld [smem:[#allocation2 + $0x180]]
    %v1525 = vstv %s1524
    %v1526 = vmul.f32 %v1525, %v31
    %v1527 = vmul.f32 %v1525, %v32
    %v1528 = vadd.f32 %v1526, 0.0
    %v1529 = vadd.f32 %v1527, 0.0
    %s1530 = sld [smem:[#allocation2 + $0x181]]
    %v1531 = vstv %s1530
    %v1532 = vmul.f32 %v1531, %v40
    %v1533 = vmul.f32 %v1531, %v41
    %v1534 = vadd.f32 %v1528, %v1532
    %v1535 = vadd.f32 %v1529, %v1533
    %s1536 = sld [smem:[#allocation2 + $0x182]]
    %v1537 = vstv %s1536
    %v1538 = vmul.f32 %v1537, %v49
    %v1539 = vmul.f32 %v1537, %v50
    %v1540 = vadd.f32 %v1534, %v1538
    %v1541 = vadd.f32 %v1535, %v1539
    %s1542 = sld [smem:[#allocation2 + $0x183]]
    %v1543 = vstv %s1542
    %v1544 = vmul.f32 %v1543, %v58
    %v1545 = vmul.f32 %v1543, %v59
    %v1546 = vadd.f32 %v1540, %v1544
    %v1547 = vadd.f32 %v1541, %v1545
    %v1548 = vpack.c.bf16 %v1546, %v1546
    %v1549 = vpack.c.bf16 %v1547, %v1547
    %s1550 = scalar_lea.vmem %s2, 1536
    %v1551 = vld [vmem:[%s1550] sm:$0xff]
    %v1552 = vld [vmem:[%s1550 + $0x8] sm:$0xff]
    %v1553 = vld [vmem:[%s1550 + $0x10] sm:$0xff]
    %v1554 = vld [vmem:[%s1550 + $0x18] sm:$0xff]
    %v1555 = vld [vmem:[%s1550 + $0x20] sm:$0xff]
    %v1556 = vld [vmem:[%s1550 + $0x28] sm:$0xff]
    %v1557 = vld [vmem:[%s1550 + $0x30] sm:$0xff]
    %v1558 = vld [vmem:[%s1550 + $0x38] sm:$0xff]
    %v1559 = vld [vmem:[%s1550 + $0x40] sm:$0xff]
    %v1560 = vld [vmem:[%s1550 + $0x48] sm:$0xff]
    %v1561 = vld [vmem:[%s1550 + $0x50] sm:$0xff]
    %v1562 = vld [vmem:[%s1550 + $0x58] sm:$0xff]
    %v1563 = vld [vmem:[%s1550 + $0x60] sm:$0xff]
    %v1564 = vld [vmem:[%s1550 + $0x68] sm:$0xff]
    %v1565 = vld [vmem:[%s1550 + $0x70] sm:$0xff]
    %v1566 = vld [vmem:[%s1550 + $0x78] sm:$0xff]
    %v1567 = vld [vmem:[%s1550 + $0x80] sm:$0xff]
    %v1568 = vld [vmem:[%s1550 + $0x88] sm:$0xff]
    %v1569 = vld [vmem:[%s1550 + $0x90] sm:$0xff]
    %v1570 = vld [vmem:[%s1550 + $0x98] sm:$0xff]
    %v1571 = vld [vmem:[%s1550 + $0xa0] sm:$0xff]
    %v1572 = vld [vmem:[%s1550 + $0xa8] sm:$0xff]
    %v1573 = vld [vmem:[%s1550 + $0xb0] sm:$0xff]
    %v1574 = vld [vmem:[%s1550 + $0xb8] sm:$0xff]
    %v1575 = vld [vmem:[%s1550 + $0xc0] sm:$0xff]
    %v1576 = vld [vmem:[%s1550 + $0xc8] sm:$0xff]
    %v1577 = vld [vmem:[%s1550 + $0xd0] sm:$0xff]
    %v1578 = vld [vmem:[%s1550 + $0xd8] sm:$0xff]
    %v1579 = vld [vmem:[%s1550 + $0xe0] sm:$0xff]
    %v1580 = vld [vmem:[%s1550 + $0xe8] sm:$0xff]
    %v1581 = vld [vmem:[%s1550 + $0xf0] sm:$0xff]
    %v1582 = vld [vmem:[%s1550 + $0xf8] sm:$0xff]
    %v1583 = vld [vmem:[%s1550 + $0x100] sm:$0xff]
    %v1584 = vld [vmem:[%s1550 + $0x108] sm:$0xff]
    %v1585 = vld [vmem:[%s1550 + $0x110] sm:$0xff]
    %v1586 = vld [vmem:[%s1550 + $0x118] sm:$0xff]
    %v1587 = vld [vmem:[%s1550 + $0x120] sm:$0xff]
    %v1588 = vld [vmem:[%s1550 + $0x128] sm:$0xff]
    %v1589 = vld [vmem:[%s1550 + $0x130] sm:$0xff]
    %v1590 = vld [vmem:[%s1550 + $0x138] sm:$0xff]
    %v1591 = vld [vmem:[%s1550 + $0x140] sm:$0xff]
    %v1592 = vld [vmem:[%s1550 + $0x148] sm:$0xff]
    %v1593 = vld [vmem:[%s1550 + $0x150] sm:$0xff]
    %v1594 = vld [vmem:[%s1550 + $0x158] sm:$0xff]
    %v1595 = vld [vmem:[%s1550 + $0x160] sm:$0xff]
    %v1596 = vld [vmem:[%s1550 + $0x168] sm:$0xff]
    %v1597 = vld [vmem:[%s1550 + $0x170] sm:$0xff]
    %v1598 = vld [vmem:[%s1550 + $0x178] sm:$0xff]
    %v1599 = vld [vmem:[%s1550 + $0x180] sm:$0xff]
    %v1600 = vld [vmem:[%s1550 + $0x188] sm:$0xff]
    %v1601 = vld [vmem:[%s1550 + $0x190] sm:$0xff]
    %v1602 = vld [vmem:[%s1550 + $0x198] sm:$0xff]
    %v1603 = vld [vmem:[%s1550 + $0x1a0] sm:$0xff]
    %v1604 = vld [vmem:[%s1550 + $0x1a8] sm:$0xff]
    %v1605 = vld [vmem:[%s1550 + $0x1b0] sm:$0xff]
    %v1606 = vld [vmem:[%s1550 + $0x1b8] sm:$0xff]
    %v1607 = vld [vmem:[%s1550 + $0x1c0] sm:$0xff]
    %v1608 = vld [vmem:[%s1550 + $0x1c8] sm:$0xff]
    %v1609 = vld [vmem:[%s1550 + $0x1d0] sm:$0xff]
    %v1610 = vld [vmem:[%s1550 + $0x1d8] sm:$0xff]
    %v1611 = vld [vmem:[%s1550 + $0x1e0] sm:$0xff]
    %v1612 = vld [vmem:[%s1550 + $0x1e8] sm:$0xff]
    %v1613 = vld [vmem:[%s1550 + $0x1f0] sm:$0xff]
    %v1614 = vld [vmem:[%s1550 + $0x1f8] sm:$0xff]
    %v1679 = vunpack.c.l.b16 %v1551
    %v1680 = vunpack.c.h.b16 %v1551
    %v1681 = vunpack.c.l.b16 %v1552
    %v1682 = vunpack.c.h.b16 %v1552
    %v1683 = vunpack.c.l.b16 %v1553
    %v1684 = vunpack.c.h.b16 %v1553
    %v1685 = vunpack.c.l.b16 %v1554
    %v1686 = vunpack.c.h.b16 %v1554
    %v1687 = vunpack.c.l.b16 %v1555
    %v1688 = vunpack.c.h.b16 %v1555
    %v1689 = vunpack.c.l.b16 %v1556
    %v1690 = vunpack.c.h.b16 %v1556
    %v1691 = vunpack.c.l.b16 %v1557
    %v1692 = vunpack.c.h.b16 %v1557
    %v1693 = vunpack.c.l.b16 %v1558
    %v1694 = vunpack.c.h.b16 %v1558
    %v1695 = vunpack.c.l.b16 %v1559
    %v1696 = vunpack.c.h.b16 %v1559
    %v1697 = vunpack.c.l.b16 %v1560
    %v1698 = vunpack.c.h.b16 %v1560
    %v1699 = vunpack.c.l.b16 %v1561
    %v1700 = vunpack.c.h.b16 %v1561
    %v1701 = vunpack.c.l.b16 %v1562
    %v1702 = vunpack.c.h.b16 %v1562
    %v1703 = vunpack.c.l.b16 %v1563
    %v1704 = vunpack.c.h.b16 %v1563
    %v1705 = vunpack.c.l.b16 %v1564
    %v1706 = vunpack.c.h.b16 %v1564
    %v1707 = vunpack.c.l.b16 %v1565
    %v1708 = vunpack.c.h.b16 %v1565
    %v1709 = vunpack.c.l.b16 %v1566
    %v1710 = vunpack.c.h.b16 %v1566
    %v1711 = vunpack.c.l.b16 %v1567
    %v1712 = vunpack.c.h.b16 %v1567
    %v1713 = vunpack.c.l.b16 %v1568
    %v1714 = vunpack.c.h.b16 %v1568
    %v1715 = vunpack.c.l.b16 %v1569
    %v1716 = vunpack.c.h.b16 %v1569
    %v1717 = vunpack.c.l.b16 %v1570
    %v1718 = vunpack.c.h.b16 %v1570
    %v1719 = vunpack.c.l.b16 %v1571
    %v1720 = vunpack.c.h.b16 %v1571
    %v1721 = vunpack.c.l.b16 %v1572
    %v1722 = vunpack.c.h.b16 %v1572
    %v1723 = vunpack.c.l.b16 %v1573
    %v1724 = vunpack.c.h.b16 %v1573
    %v1725 = vunpack.c.l.b16 %v1574
    %v1726 = vunpack.c.h.b16 %v1574
    %v1727 = vunpack.c.l.b16 %v1575
    %v1728 = vunpack.c.h.b16 %v1575
    %v1729 = vunpack.c.l.b16 %v1576
    %v1730 = vunpack.c.h.b16 %v1576
    %v1731 = vunpack.c.l.b16 %v1577
    %v1732 = vunpack.c.h.b16 %v1577
    %v1733 = vunpack.c.l.b16 %v1578
    %v1734 = vunpack.c.h.b16 %v1578
    %v1735 = vunpack.c.l.b16 %v1579
    %v1736 = vunpack.c.h.b16 %v1579
    %v1737 = vunpack.c.l.b16 %v1580
    %v1738 = vunpack.c.h.b16 %v1580
    %v1739 = vunpack.c.l.b16 %v1581
    %v1740 = vunpack.c.h.b16 %v1581
    %v1741 = vunpack.c.l.b16 %v1582
    %v1742 = vunpack.c.h.b16 %v1582
    %v1743 = vunpack.c.l.b16 %v1583
    %v1744 = vunpack.c.h.b16 %v1583
    %v1745 = vunpack.c.l.b16 %v1584
    %v1746 = vunpack.c.h.b16 %v1584
    %v1747 = vunpack.c.l.b16 %v1585
    %v1748 = vunpack.c.h.b16 %v1585
    %v1749 = vunpack.c.l.b16 %v1586
    %v1750 = vunpack.c.h.b16 %v1586
    %v1751 = vunpack.c.l.b16 %v1587
    %v1752 = vunpack.c.h.b16 %v1587
    %v1753 = vunpack.c.l.b16 %v1588
    %v1754 = vunpack.c.h.b16 %v1588
    %v1755 = vunpack.c.l.b16 %v1589
    %v1756 = vunpack.c.h.b16 %v1589
    %v1757 = vunpack.c.l.b16 %v1590
    %v1758 = vunpack.c.h.b16 %v1590
    %v1759 = vunpack.c.l.b16 %v1591
    %v1760 = vunpack.c.h.b16 %v1591
    %v1761 = vunpack.c.l.b16 %v1592
    %v1762 = vunpack.c.h.b16 %v1592
    %v1763 = vunpack.c.l.b16 %v1593
    %v1764 = vunpack.c.h.b16 %v1593
    %v1765 = vunpack.c.l.b16 %v1594
    %v1766 = vunpack.c.h.b16 %v1594
    %v1767 = vunpack.c.l.b16 %v1595
    %v1768 = vunpack.c.h.b16 %v1595
    %v1769 = vunpack.c.l.b16 %v1596
    %v1770 = vunpack.c.h.b16 %v1596
    %v1771 = vunpack.c.l.b16 %v1597
    %v1772 = vunpack.c.h.b16 %v1597
    %v1773 = vunpack.c.l.b16 %v1598
    %v1774 = vunpack.c.h.b16 %v1598
    %v1775 = vunpack.c.l.b16 %v1599
    %v1776 = vunpack.c.h.b16 %v1599
    %v1777 = vunpack.c.l.b16 %v1600
    %v1778 = vunpack.c.h.b16 %v1600
    %v1779 = vunpack.c.l.b16 %v1601
    %v1780 = vunpack.c.h.b16 %v1601
    %v1781 = vunpack.c.l.b16 %v1602
    %v1782 = vunpack.c.h.b16 %v1602
    %v1783 = vunpack.c.l.b16 %v1603
    %v1784 = vunpack.c.h.b16 %v1603
    %v1785 = vunpack.c.l.b16 %v1604
    %v1786 = vunpack.c.h.b16 %v1604
    %v1787 = vunpack.c.l.b16 %v1605
    %v1788 = vunpack.c.h.b16 %v1605
    %v1789 = vunpack.c.l.b16 %v1606
    %v1790 = vunpack.c.h.b16 %v1606
    %v1791 = vunpack.c.l.b16 %v1607
    %v1792 = vunpack.c.h.b16 %v1607
    %v1793 = vunpack.c.l.b16 %v1608
    %v1794 = vunpack.c.h.b16 %v1608
    %v1795 = vunpack.c.l.b16 %v1609
    %v1796 = vunpack.c.h.b16 %v1609
    %v1797 = vunpack.c.l.b16 %v1610
    %v1798 = vunpack.c.h.b16 %v1610
    %v1799 = vunpack.c.l.b16 %v1611
    %v1800 = vunpack.c.h.b16 %v1611
    %v1801 = vunpack.c.l.b16 %v1612
    %v1802 = vunpack.c.h.b16 %v1612
    %v1803 = vunpack.c.l.b16 %v1613
    %v1804 = vunpack.c.h.b16 %v1613
    %v1805 = vunpack.c.l.b16 %v1614
    %v1806 = vunpack.c.h.b16 %v1614
    %v1807 = vpack.c.b16 %v1683, %v1679
    %v1808 = vpack.c.b16 %v1684, %v1680
    %v1809 = vpack.c.b16 %v1685, %v1681
    %v1810 = vpack.c.b16 %v1686, %v1682
    %v1811 = vpack.c.b16 %v1691, %v1687
    %v1812 = vpack.c.b16 %v1692, %v1688
    %v1813 = vpack.c.b16 %v1693, %v1689
    %v1814 = vpack.c.b16 %v1694, %v1690
    %v1815 = vpack.c.b16 %v1699, %v1695
    %v1816 = vpack.c.b16 %v1700, %v1696
    %v1817 = vpack.c.b16 %v1701, %v1697
    %v1818 = vpack.c.b16 %v1702, %v1698
    %v1819 = vpack.c.b16 %v1707, %v1703
    %v1820 = vpack.c.b16 %v1708, %v1704
    %v1821 = vpack.c.b16 %v1709, %v1705
    %v1822 = vpack.c.b16 %v1710, %v1706
    %v1823 = vpack.c.b16 %v1715, %v1711
    %v1824 = vpack.c.b16 %v1716, %v1712
    %v1825 = vpack.c.b16 %v1717, %v1713
    %v1826 = vpack.c.b16 %v1718, %v1714
    %v1827 = vpack.c.b16 %v1723, %v1719
    %v1828 = vpack.c.b16 %v1724, %v1720
    %v1829 = vpack.c.b16 %v1725, %v1721
    %v1830 = vpack.c.b16 %v1726, %v1722
    %v1831 = vpack.c.b16 %v1731, %v1727
    %v1832 = vpack.c.b16 %v1732, %v1728
    %v1833 = vpack.c.b16 %v1733, %v1729
    %v1834 = vpack.c.b16 %v1734, %v1730
    %v1835 = vpack.c.b16 %v1739, %v1735
    %v1836 = vpack.c.b16 %v1740, %v1736
    %v1837 = vpack.c.b16 %v1741, %v1737
    %v1838 = vpack.c.b16 %v1742, %v1738
    %v1839 = vpack.c.b16 %v1747, %v1743
    %v1840 = vpack.c.b16 %v1748, %v1744
    %v1841 = vpack.c.b16 %v1749, %v1745
    %v1842 = vpack.c.b16 %v1750, %v1746
    %v1843 = vpack.c.b16 %v1755, %v1751
    %v1844 = vpack.c.b16 %v1756, %v1752
    %v1845 = vpack.c.b16 %v1757, %v1753
    %v1846 = vpack.c.b16 %v1758, %v1754
    %v1847 = vpack.c.b16 %v1763, %v1759
    %v1848 = vpack.c.b16 %v1764, %v1760
    %v1849 = vpack.c.b16 %v1765, %v1761
    %v1850 = vpack.c.b16 %v1766, %v1762
    %v1851 = vpack.c.b16 %v1771, %v1767
    %v1852 = vpack.c.b16 %v1772, %v1768
    %v1853 = vpack.c.b16 %v1773, %v1769
    %v1854 = vpack.c.b16 %v1774, %v1770
    %v1855 = vpack.c.b16 %v1779, %v1775
    %v1856 = vpack.c.b16 %v1780, %v1776
    %v1857 = vpack.c.b16 %v1781, %v1777
    %v1858 = vpack.c.b16 %v1782, %v1778
    %v1859 = vpack.c.b16 %v1787, %v1783
    %v1860 = vpack.c.b16 %v1788, %v1784
    %v1861 = vpack.c.b16 %v1789, %v1785
    %v1862 = vpack.c.b16 %v1790, %v1786
    %v1863 = vpack.c.b16 %v1795, %v1791
    %v1864 = vpack.c.b16 %v1796, %v1792
    %v1865 = vpack.c.b16 %v1797, %v1793
    %v1866 = vpack.c.b16 %v1798, %v1794
    %v1867 = vpack.c.b16 %v1803, %v1799
    %v1868 = vpack.c.b16 %v1804, %v1800
    %v1869 = vpack.c.b16 %v1805, %v1801
    %v1870 = vpack.c.b16 %v1806, %v1802
    %1935 = vmatprep.subr.bf16.mxu0 %v1836
    %1936 = vmatpush1.bf16.msra.mxu0 %v1835
    %1937 = vmatprep.subr.bf16.mxu0 %v1832
    %1938 = vmatpush1.bf16.msra.mxu0 %v1831
    %1939 = vmatprep.subr.bf16.mxu0 %v1828
    %1940 = vmatpush1.bf16.msra.mxu0 %v1827
    %1941 = vmatprep.subr.bf16.mxu0 %v1824
    %1942 = vmatpush1.bf16.msra.mxu0 %v1823
    %1943 = vmatprep.subr.bf16.mxu0 %v1820
    %1944 = vmatpush1.bf16.msra.mxu0 %v1819
    %1945 = vmatprep.subr.bf16.mxu0 %v1816
    %1946 = vmatpush1.bf16.msra.mxu0 %v1815
    %1947 = vmatprep.subr.bf16.mxu0 %v1812
    %1948 = vmatpush1.bf16.msra.mxu0 %v1811
    %1949 = vmatprep.subr.bf16.mxu0 %v1808
    %1950 = vmatpush1.bf16.msra.mxu0 %v1807
    %1951 = vmatprep.subr.bf16.mxu0 %v1868
    %1952 = vmatpush2.bf16.msra.mxu0 %v1867
    %1953 = vmatprep.subr.bf16.mxu0 %v1864
    %1954 = vmatpush2.bf16.msra.mxu0 %v1863
    %1955 = vmatprep.subr.bf16.mxu0 %v1860
    %1956 = vmatpush2.bf16.msra.mxu0 %v1859
    %1957 = vmatprep.subr.bf16.mxu0 %v1856
    %1958 = vmatpush2.bf16.msra.mxu0 %v1855
    %1959 = vmatprep.subr.bf16.mxu0 %v1852
    %1960 = vmatpush2.bf16.msra.mxu0 %v1851
    %1961 = vmatprep.subr.bf16.mxu0 %v1848
    %1962 = vmatpush2.bf16.msra.mxu0 %v1847
    %1963 = vmatprep.subr.bf16.mxu0 %v1844
    %1964 = vmatpush2.bf16.msra.mxu0 %v1843
    %1965 = vmatprep.subr.bf16.mxu0 %v1840
    %1966 = vmatpush2.bf16.msra.mxu0 %v1839
    %1967 = vmatprep.mubr.bf16.mxu0 %v1549
    %1968 = vmatmul.mubr.bf16.gmra.mxu0 %v1548
    %v1969 = vpop.f32.mrf.mxu0
    %v1970 = vadd.f32 0.0, %v1969
    %v1971 = vpop.f32.mrf.mxu0
    %v1972 = vadd.f32 0.0, %v1971
    %v1973 = vpop.f32.mrf.mxu0
    %v1974 = vpop.f32.mrf.mxu0
    %1975 = vdwg.mxu0
    %1976 = vmatprep.subr.bf16.mxu0 %v1838
    %1977 = vmatpush1.bf16.msra.mxu0 %v1837
    %1978 = vmatprep.subr.bf16.mxu0 %v1834
    %1979 = vmatpush1.bf16.msra.mxu0 %v1833
    %1980 = vmatprep.subr.bf16.mxu0 %v1830
    %1981 = vmatpush1.bf16.msra.mxu0 %v1829
    %1982 = vmatprep.subr.bf16.mxu0 %v1826
    %1983 = vmatpush1.bf16.msra.mxu0 %v1825
    %1984 = vmatprep.subr.bf16.mxu0 %v1822
    %1985 = vmatpush1.bf16.msra.mxu0 %v1821
    %1986 = vmatprep.subr.bf16.mxu0 %v1818
    %1987 = vmatpush1.bf16.msra.mxu0 %v1817
    %1988 = vmatprep.subr.bf16.mxu0 %v1814
    %1989 = vmatpush1.bf16.msra.mxu0 %v1813
    %1990 = vmatprep.subr.bf16.mxu0 %v1810
    %1991 = vmatpush1.bf16.msra.mxu0 %v1809
    %1992 = vmatprep.subr.bf16.mxu0 %v1870
    %1993 = vmatpush2.bf16.msra.mxu0 %v1869
    %1994 = vmatprep.subr.bf16.mxu0 %v1866
    %1995 = vmatpush2.bf16.msra.mxu0 %v1865
    %1996 = vmatprep.subr.bf16.mxu0 %v1862
    %1997 = vmatpush2.bf16.msra.mxu0 %v1861
    %1998 = vmatprep.subr.bf16.mxu0 %v1858
    %1999 = vmatpush2.bf16.msra.mxu0 %v1857
    %2000 = vmatprep.subr.bf16.mxu0 %v1854
    %2001 = vmatpush2.bf16.msra.mxu0 %v1853
    %2002 = vmatprep.subr.bf16.mxu0 %v1850
    %2003 = vmatpush2.bf16.msra.mxu0 %v1849
    %2004 = vmatprep.subr.bf16.mxu0 %v1846
    %2005 = vmatpush2.bf16.msra.mxu0 %v1845
    %2006 = vmatprep.subr.bf16.mxu0 %v1842
    %2007 = vmatpush2.bf16.msra.mxu0 %v1841
    %2008 = vmatprep.mubr.bf16.mxu0 %v1549
    %2009 = vmatmul.mubr.bf16.gmra.mxu0 %v1548
    %v2010 = vpop.f32.mrf.mxu0
    %v2011 = vadd.f32 0.0, %v2010
    %v2012 = vpop.f32.mrf.mxu0
    %v2013 = vadd.f32 0.0, %v2012
    %v2014 = vpop.f32.mrf.mxu0
    %v2015 = vpop.f32.mrf.mxu0
    %2016 = vdwg.mxu0
    %v2017 = vadd.f32 %v1520, %v1970
    %v2018 = vadd.f32 %v1521, %v1972
    %v2019 = vadd.f32 %v1522, %v2011
    %v2020 = vadd.f32 %v1523, %v2013
    %v2021 = vld [vmem:[%s3] sm:$0xf]
    %v2023 = vlaneseq
    %v2024 = vshrl.u32 %v2023, 7
    %v2025 = vsub.s32 0, %v2024
    %v2026 = vrot.slane %v2021, %v2025
    %v2027 = vlaneseq
    %v2028 = vshrl.u32 %v2027, 7
    %v2029 = vsub.s32 1, %v2028
    %v2030 = vrot.slane %v2021, %v2029
    %v2031 = vlaneseq
    %v2032 = vshrl.u32 %v2031, 7
    %v2033 = vsub.s32 2, %v2032
    %v2034 = vrot.slane %v2021, %v2033
    %v2035 = vlaneseq
    %v2036 = vshrl.u32 %v2035, 7
    %v2037 = vsub.s32 3, %v2036
    %v2038 = vrot.slane %v2021, %v2037
    %v2043 = vadd.f32 %v2017, %v2026
    %v2044 = vadd.f32 %v2018, %v2030
    %v2045 = vadd.f32 %v2019, %v2034
    %v2046 = vadd.f32 %v2020, %v2038
    %2047 = vst [vmem:[%s4] sm:$0xff] %v2043
    %2048 = vst [vmem:[%s4 + $0x8] sm:$0xff] %v2044
    %2049 = vst [vmem:[%s4 + $0x10] sm:$0xff] %v2045
    %2050 = vst [vmem:[%s4 + $0x18] sm:$0xff] %v2046
    // Predicated region
    $region22: #{concatnet_forward.1} parent=1 // pred_check
      _
    $region23: #{concatnet_forward.1} parent=1 // pred_check_branch
      %2052 = sbr.rel (0) target = $region25
    $region24: #{concatnet_forward.1} parent=1 // pred_region
      _
    $region25: #{concatnet_forward.1} parent=1 // pred_fallthru
      _
    // Predicated region
    $region26: #{concatnet_forward.1} parent=1 // pred_check
      _
    $region27: #{concatnet_forward.1} parent=1 // pred_check_branch
      %2054 = sbr.rel (0) target = $region29
    $region28: #{concatnet_forward.1} parent=1 // pred_region
      _
    $region29: #{concatnet_forward.1} parent=1 // pred_fallthru
      _
    %2055 = vsyncpa [#allocation3], 1

</llo_original>
